<compile_context>
chip_gen: v7x
topology: tpu7x:2x2x1
jax: 0.10.0
libtpu: 0.0.40
codegen_flags: <defaults>
</compile_context>

<pallas_src>
import jax
import jax.numpy as jnp
from jax.experimental import pallas as pl
from jax.experimental.pallas import tpu as pltpu


NEG_SLOPE = 0.01          # torch.nn.LeakyReLU default negative_slope
LANE_TILE = 4096          # batch rows (lane axis) per grid step; sweep 2048/4096/8192


def _leaky(x):
    # valid for 0 < slope < 1: max(x, slope*x) == leaky_relu(x)
    return jnp.maximum(x, NEG_SLOPE * x)


def _layer(w_ref, h, b_ref, *, activate=True):
    # w: (Dout, Din) bf16, h: (Din, TM) bf16, b: (Dout, 1) f32 -> (Dout, TM) f32
    y = jnp.dot(w_ref[...], h, preferred_element_type=jnp.float32) + b_ref[...]
    return _leaky(y) if activate else y


def _first_layer(w_ref, x, b_ref):
    # Batch-major input x: (TM, Din) bf16; contract the feature axis of both operands
    # ("A @ B^T") so the result is feature-major (Dout, TM) with batch on the lane axis —
    # no wrapper-side transpose, the (small) relayout happens on the otherwise-idle XLU.
    y = jax.lax.dot_general(
        w_ref[...], x,
        dimension_numbers=(((1,), (1,)), ((), ())),
        preferred_element_type=jnp.float32)
    return _leaky(y + b_ref[...])


def two_tower_kernel(u_ref, r_ref,
                     t1w0, t1b0, t1w1, t1b1,          # tower 1
                     t2w0, t2b0, t2w1, t2b1,          # tower 2
                     bw0a, bw0b, bb0,                 # bridge L0 (weight split = concat)
                     bw1, bb1, bw2, bb2, bw3, bb3,    # bridge L1..L3
                     bw4, bb4,                        # final Linear -> 1
                     out_ref):
    u = u_ref[...].astype(jnp.bfloat16)               # (TM, input_dim)
    r = r_ref[...].astype(jnp.bfloat16)

    # Towers (feature-major activations from here on).
    h1 = _first_layer(t1w0, u, t1b0).astype(jnp.bfloat16)            # (T1, TM)
    h1 = _layer(t1w1, h1, t1b1).astype(jnp.bfloat16)                 # (H,  TM)
    h2 = _first_layer(t2w0, r, t2b0).astype(jnp.bfloat16)
    h2 = _layer(t2w1, h2, t2b2 := t2b1).astype(jnp.bfloat16)

    # Bridge L0: column-split weight replaces torch.cat([h1, h2], -1).
    g = jnp.dot(bw0a[...], h1, preferred_element_type=jnp.float32)
    g = g + jnp.dot(bw0b[...], h2, preferred_element_type=jnp.float32)
    g = _leaky(g + bb0[...]).astype(jnp.bfloat16)                    # (2H, TM)

    g = _layer(bw1, g, bb1).astype(jnp.bfloat16)                     # (bridge1, TM)
    g = _layer(bw2, g, bb2).astype(jnp.bfloat16)                     # (bridge2, TM)
    g = _layer(bw3, g, bb3).astype(jnp.bfloat16)                     # (bridge3, TM)
    y = _layer(bw4, g, bb4, activate=False)                          # (1, TM) f32

    out_ref[...] = y.astype(out_ref.dtype)
    # TODO(synk): nn.Dropout is inference-mode identity here (no RNG mask applied).


def _round_up(x, m):
    return ((x + m - 1) // m) * m


@jax.jit
def two_tower_forward(users, reviews, *flat_params):
    B, input_dim = users.shape

    # Adaptive batch tiling: pad B to a multiple of 128, then split it into the fewest
    # equal lane tiles <= LANE_TILE (waste < 128 rows per tile). Keep >= 2 tiles when the
    # batch allows it so the "parallel" axis can shard across v7x's two TensorCores.
    b128 = _round_up(B, 128)
    n_tiles = pl.cdiv(b128, LANE_TILE)
    if n_tiles == 1 and b128 >= 256:
        n_tiles = 2
    tm = _round_up(pl.cdiv(b128, n_tiles), 128)
    b_pad = tm * n_tiles

    if b_pad != B:
        # Pad (and cast to bf16 — fused into the same copy) only when unavoidable.
        users = jnp.pad(users.astype(jnp.bfloat16), ((0, b_pad - B), (0, 0)))
        reviews = jnp.pad(reviews.astype(jnp.bfloat16), ((0, b_pad - B), (0, 0)))

    x_spec = pl.BlockSpec((tm, input_dim), lambda i: (i, 0))

    def resident(p):
        return pl.BlockSpec(p.shape, lambda i: (0, 0))   # weights/biases stay VMEM-resident

    in_specs = [x_spec, x_spec] + [resident(p) for p in flat_params]

    out = pl.pallas_call(
        two_tower_kernel,
        out_shape=jax.ShapeDtypeStruct((1, b_pad), jnp.float32),
        grid=(n_tiles,),
        in_specs=in_specs,
        out_specs=pl.BlockSpec((1, tm), lambda i: (0, i)),
        compiler_params=pltpu.CompilerParams(
            dimension_semantics=("parallel",),
            vmem_limit_bytes=32 * 1024 * 1024),
    )(users, reviews, *flat_params)

    return out[0, :B].reshape(B, 1)


# ----------------------------- parameter construction -----------------------------

def _xavier(key, dout, din, dtype=jnp.float32):
    # matches torch.nn.init.xavier_uniform_ (gain=1); torch Linear layout (out, in)
    limit = (6.0 / (din + dout)) ** 0.5
    return jax.random.uniform(key, (dout, din), dtype, minval=-limit, maxval=limit)


def init_params(key, input_dim, hidden_dim, tower_1_dim,
                bridge_dim_1, bridge_dim_2, bridge_dim_3):
    dims = [
        (tower_1_dim, input_dim), (hidden_dim, tower_1_dim),   # tower1
        (tower_1_dim, input_dim), (hidden_dim, tower_1_dim),   # tower2
        (2 * hidden_dim, 2 * hidden_dim),
        (bridge_dim_1, 2 * hidden_dim),
        (bridge_dim_2, bridge_dim_1),
        (bridge_dim_3, bridge_dim_2),
        (1, bridge_dim_3),
    ]
    keys = jax.random.split(key, len(dims))
    weights = [_xavier(k, do, di) for k, (do, di) in zip(keys, dims)]
    biases = [jnp.zeros((do, 1), jnp.float32) for (do, _) in dims]  # torch bias.fill_(0)
    return weights, biases


def prepare_params(weights, biases, hidden_dim, compute_dtype=jnp.bfloat16):
    """Flatten params for the kernel: bf16 weights, f32 (Dout, 1) biases.

    The first bridge weight is split into its two column halves so torch.cat([t1, t2], -1)
    becomes w0a @ h1 + w0b @ h2 inside the kernel (no concat, no block-diag zero padding).
    """
    (t1w0, t1w1, t2w0, t2w1, bw0, bw1, bw2, bw3, bw4) = weights
    (t1b0, t1b1, t2b0, t2b1, bb0, bb1, bb2, bb3, bb4) = biases
    bw0a, bw0b = bw0[:, :hidden_dim], bw0[:, hidden_dim:]
    ordered = [
        (t1w0, t1b0), (t1w1, t1b1),
        (t2w0, t2b0), (t2w1, t2b1),
    ]
    flat = []
    for w, b in ordered:
        flat += [w.astype(compute_dtype), b]
    flat += [bw0a.astype(compute_dtype), bw0b.astype(compute_dtype), bb0]
    for w, b in [(bw1, bb1), (bw2, bb2), (bw3, bb3), (bw4, bb4)]:
        flat += [w.astype(compute_dtype), b]
    return flat


if __name__ == "__main__":
    batch = 8
    input_dim = 32
    hidden_dim = 32
    tower_1_dim = 64
    bridge_dim_1 = 64
    bridge_dim_2 = 32
    bridge_dim_3 = 16

    key = jax.random.PRNGKey(0)
    k_users, k_reviews, k_params = jax.random.split(key, 3)

    users = jax.random.normal(k_users, (batch, input_dim), jnp.float32)
    reviews = jax.random.normal(k_reviews, (batch, input_dim), jnp.float32)

    weights, biases = init_params(k_params, input_dim, hidden_dim, tower_1_dim,
                                  bridge_dim_1, bridge_dim_2, bridge_dim_3)
    flat_params = prepare_params(weights, biases, hidden_dim)

    out = two_tower_forward(users, reviews, *flat_params)
    jax.block_until_ready(out)
    assert out.shape == (batch, 1), out.shape
    print("KERNEL_OK")
</pallas_src>

<mosaic_0001>
module attributes {stable_mosaic.version = 11 : i64} {
  func.func @two_tower_kernel(%arg0: i32, %arg1: memref<128x32xbf16, #tpu.memory_space<vmem>>, %arg2: memref<128x32xbf16, #tpu.memory_space<vmem>>, %arg3: memref<64x32xbf16, #tpu.memory_space<vmem>>, %arg4: memref<64x1xf32, #tpu.memory_space<vmem>>, %arg5: memref<32x64xbf16, #tpu.memory_space<vmem>>, %arg6: memref<32x1xf32, #tpu.memory_space<vmem>>, %arg7: memref<64x32xbf16, #tpu.memory_space<vmem>>, %arg8: memref<64x1xf32, #tpu.memory_space<vmem>>, %arg9: memref<32x64xbf16, #tpu.memory_space<vmem>>, %arg10: memref<32x1xf32, #tpu.memory_space<vmem>>, %arg11: memref<64x32xbf16, #tpu.memory_space<vmem>>, %arg12: memref<64x32xbf16, #tpu.memory_space<vmem>>, %arg13: memref<64x1xf32, #tpu.memory_space<vmem>>, %arg14: memref<64x64xbf16, #tpu.memory_space<vmem>>, %arg15: memref<64x1xf32, #tpu.memory_space<vmem>>, %arg16: memref<32x64xbf16, #tpu.memory_space<vmem>>, %arg17: memref<32x1xf32, #tpu.memory_space<vmem>>, %arg18: memref<16x32xbf16, #tpu.memory_space<vmem>>, %arg19: memref<16x1xf32, #tpu.memory_space<vmem>>, %arg20: memref<1x16xbf16, #tpu.memory_space<vmem>>, %arg21: memref<1x1xf32, #tpu.memory_space<vmem>>, %arg22: memref<1x128xf32, #tpu.memory_space<vmem>>) attributes {dimension_semantics = [#tpu.dimension_semantics<parallel>], iteration_bounds = array<i64: 1>, scalar_prefetch = 0 : i64, scratch_operands = 0 : i64, tpu.core_type = #tpu.core_type<tc>, window_params = [{transform_indices = @transform_0, window_bounds = array<i64: 128, 32>}, {transform_indices = @transform_1, window_bounds = array<i64: 128, 32>}, {pipeline_mode = #tpu.pipeline_mode<synchronous>, transform_indices = @transform_2, window_bounds = array<i64: 64, 32>}, {pipeline_mode = #tpu.pipeline_mode<synchronous>, transform_indices = @transform_3, window_bounds = array<i64: 64, 1>}, {pipeline_mode = #tpu.pipeline_mode<synchronous>, transform_indices = @transform_4, window_bounds = array<i64: 32, 64>}, {pipeline_mode = #tpu.pipeline_mode<synchronous>, transform_indices = @transform_5, window_bounds = array<i64: 32, 1>}, {pipeline_mode = #tpu.pipeline_mode<synchronous>, transform_indices = @transform_6, window_bounds = array<i64: 64, 32>}, {pipeline_mode = #tpu.pipeline_mode<synchronous>, transform_indices = @transform_7, window_bounds = array<i64: 64, 1>}, {pipeline_mode = #tpu.pipeline_mode<synchronous>, transform_indices = @transform_8, window_bounds = array<i64: 32, 64>}, {pipeline_mode = #tpu.pipeline_mode<synchronous>, transform_indices = @transform_9, window_bounds = array<i64: 32, 1>}, {pipeline_mode = #tpu.pipeline_mode<synchronous>, transform_indices = @transform_10, window_bounds = array<i64: 64, 32>}, {pipeline_mode = #tpu.pipeline_mode<synchronous>, transform_indices = @transform_11, window_bounds = array<i64: 64, 32>}, {pipeline_mode = #tpu.pipeline_mode<synchronous>, transform_indices = @transform_12, window_bounds = array<i64: 64, 1>}, {pipeline_mode = #tpu.pipeline_mode<synchronous>, transform_indices = @transform_13, window_bounds = array<i64: 64, 64>}, {pipeline_mode = #tpu.pipeline_mode<synchronous>, transform_indices = @transform_14, window_bounds = array<i64: 64, 1>}, {pipeline_mode = #tpu.pipeline_mode<synchronous>, transform_indices = @transform_15, window_bounds = array<i64: 32, 64>}, {pipeline_mode = #tpu.pipeline_mode<synchronous>, transform_indices = @transform_16, window_bounds = array<i64: 32, 1>}, {pipeline_mode = #tpu.pipeline_mode<synchronous>, transform_indices = @transform_17, window_bounds = array<i64: 16, 32>}, {pipeline_mode = #tpu.pipeline_mode<synchronous>, transform_indices = @transform_18, window_bounds = array<i64: 16, 1>}, {pipeline_mode = #tpu.pipeline_mode<synchronous>, transform_indices = @transform_19, window_bounds = array<i64: 1, 16>}, {pipeline_mode = #tpu.pipeline_mode<synchronous>, transform_indices = @transform_20, window_bounds = array<i64: 1, 1>}, {transform_indices = @transform_21, window_bounds = array<i64: 1, 128>}]} {
    %c0 = arith.constant 0 : index
    %c0_0 = arith.constant 0 : index
    %0 = vector.load %arg1[%c0, %c0_0] : memref<128x32xbf16, #tpu.memory_space<vmem>>, vector<128x32xbf16>
    %c0_1 = arith.constant 0 : index
    %c0_2 = arith.constant 0 : index
    %1 = vector.load %arg2[%c0_1, %c0_2] : memref<128x32xbf16, #tpu.memory_space<vmem>>, vector<128x32xbf16>
    %c0_3 = arith.constant 0 : index
    %c0_4 = arith.constant 0 : index
    %2 = vector.load %arg3[%c0_3, %c0_4] : memref<64x32xbf16, #tpu.memory_space<vmem>>, vector<64x32xbf16>
    %cst = arith.constant dense<0.000000e+00> : vector<64x128xf32>
    %3 = tpu.matmul %2, %0, %cst {dimension_numbers = #tpu.dot_dimension_numbers<[1], [1], [0], [0], [0, 0, 1, 0], [], []>} : vector<64x32xbf16>, vector<128x32xbf16>, vector<64x128xf32> -> vector<64x128xf32>
    %c0_5 = arith.constant 0 : index
    %c0_6 = arith.constant 0 : index
    %4 = vector.load %arg4[%c0_5, %c0_6] : memref<64x1xf32, #tpu.memory_space<vmem>>, vector<64x1xf32>
    %5 = vector.broadcast %4 : vector<64x1xf32> to vector<64x128xf32>
    %6 = arith.addf %3, %5 : vector<64x128xf32>
    %cst_7 = arith.constant 0.00999999977 : f32
    %7 = vector.broadcast %cst_7 : f32 to vector<64x128xf32>
    %8 = arith.mulf %7, %6 : vector<64x128xf32>
    %9 = arith.maximumf %6, %8 : vector<64x128xf32>
    %10 = arith.truncf %9 : vector<64x128xf32> to vector<64x128xbf16>
    %c0_8 = arith.constant 0 : index
    %c0_9 = arith.constant 0 : index
    %11 = vector.load %arg5[%c0_8, %c0_9] : memref<32x64xbf16, #tpu.memory_space<vmem>>, vector<32x64xbf16>
    %cst_10 = arith.constant dense<0.000000e+00> : vector<32x128xf32>
    %12 = tpu.matmul %11, %10, %cst_10 {dimension_numbers = #tpu.dot_dimension_numbers<[1], [0], [0], [1], [0, 0, 1, 1], [], []>} : vector<32x64xbf16>, vector<64x128xbf16>, vector<32x128xf32> -> vector<32x128xf32>
    %c0_11 = arith.constant 0 : index
    %c0_12 = arith.constant 0 : index
    %13 = vector.load %arg6[%c0_11, %c0_12] : memref<32x1xf32, #tpu.memory_space<vmem>>, vector<32x1xf32>
    %14 = vector.broadcast %13 : vector<32x1xf32> to vector<32x128xf32>
    %15 = arith.addf %12, %14 : vector<32x128xf32>
    %cst_13 = arith.constant 0.00999999977 : f32
    %16 = vector.broadcast %cst_13 : f32 to vector<32x128xf32>
    %17 = arith.mulf %16, %15 : vector<32x128xf32>
    %18 = arith.maximumf %15, %17 : vector<32x128xf32>
    %19 = arith.truncf %18 : vector<32x128xf32> to vector<32x128xbf16>
    %c0_14 = arith.constant 0 : index
    %c0_15 = arith.constant 0 : index
    %20 = vector.load %arg7[%c0_14, %c0_15] : memref<64x32xbf16, #tpu.memory_space<vmem>>, vector<64x32xbf16>
    %cst_16 = arith.constant dense<0.000000e+00> : vector<64x128xf32>
    %21 = tpu.matmul %20, %1, %cst_16 {dimension_numbers = #tpu.dot_dimension_numbers<[1], [1], [0], [0], [0, 0, 1, 0], [], []>} : vector<64x32xbf16>, vector<128x32xbf16>, vector<64x128xf32> -> vector<64x128xf32>
    %c0_17 = arith.constant 0 : index
    %c0_18 = arith.constant 0 : index
    %22 = vector.load %arg8[%c0_17, %c0_18] : memref<64x1xf32, #tpu.memory_space<vmem>>, vector<64x1xf32>
    %23 = vector.broadcast %22 : vector<64x1xf32> to vector<64x128xf32>
    %24 = arith.addf %21, %23 : vector<64x128xf32>
    %cst_19 = arith.constant 0.00999999977 : f32
    %25 = vector.broadcast %cst_19 : f32 to vector<64x128xf32>
    %26 = arith.mulf %25, %24 : vector<64x128xf32>
    %27 = arith.maximumf %24, %26 : vector<64x128xf32>
    %28 = arith.truncf %27 : vector<64x128xf32> to vector<64x128xbf16>
    %c0_20 = arith.constant 0 : index
    %c0_21 = arith.constant 0 : index
    %29 = vector.load %arg9[%c0_20, %c0_21] : memref<32x64xbf16, #tpu.memory_space<vmem>>, vector<32x64xbf16>
    %cst_22 = arith.constant dense<0.000000e+00> : vector<32x128xf32>
    %30 = tpu.matmul %29, %28, %cst_22 {dimension_numbers = #tpu.dot_dimension_numbers<[1], [0], [0], [1], [0, 0, 1, 1], [], []>} : vector<32x64xbf16>, vector<64x128xbf16>, vector<32x128xf32> -> vector<32x128xf32>
    %c0_23 = arith.constant 0 : index
    %c0_24 = arith.constant 0 : index
    %31 = vector.load %arg10[%c0_23, %c0_24] : memref<32x1xf32, #tpu.memory_space<vmem>>, vector<32x1xf32>
    %32 = vector.broadcast %31 : vector<32x1xf32> to vector<32x128xf32>
    %33 = arith.addf %30, %32 : vector<32x128xf32>
    %cst_25 = arith.constant 0.00999999977 : f32
    %34 = vector.broadcast %cst_25 : f32 to vector<32x128xf32>
    %35 = arith.mulf %34, %33 : vector<32x128xf32>
    %36 = arith.maximumf %33, %35 : vector<32x128xf32>
    %37 = arith.truncf %36 : vector<32x128xf32> to vector<32x128xbf16>
    %c0_26 = arith.constant 0 : index
    %c0_27 = arith.constant 0 : index
    %38 = vector.load %arg11[%c0_26, %c0_27] : memref<64x32xbf16, #tpu.memory_space<vmem>>, vector<64x32xbf16>
    %cst_28 = arith.constant dense<0.000000e+00> : vector<64x128xf32>
    %39 = tpu.matmul %38, %19, %cst_28 {dimension_numbers = #tpu.dot_dimension_numbers<[1], [0], [0], [1], [0, 0, 1, 1], [], []>} : vector<64x32xbf16>, vector<32x128xbf16>, vector<64x128xf32> -> vector<64x128xf32>
    %c0_29 = arith.constant 0 : index
    %c0_30 = arith.constant 0 : index
    %40 = vector.load %arg12[%c0_29, %c0_30] : memref<64x32xbf16, #tpu.memory_space<vmem>>, vector<64x32xbf16>
    %cst_31 = arith.constant dense<0.000000e+00> : vector<64x128xf32>
    %41 = tpu.matmul %40, %37, %cst_31 {dimension_numbers = #tpu.dot_dimension_numbers<[1], [0], [0], [1], [0, 0, 1, 1], [], []>} : vector<64x32xbf16>, vector<32x128xbf16>, vector<64x128xf32> -> vector<64x128xf32>
    %42 = arith.addf %39, %41 : vector<64x128xf32>
    %c0_32 = arith.constant 0 : index
    %c0_33 = arith.constant 0 : index
    %43 = vector.load %arg13[%c0_32, %c0_33] : memref<64x1xf32, #tpu.memory_space<vmem>>, vector<64x1xf32>
    %44 = vector.broadcast %43 : vector<64x1xf32> to vector<64x128xf32>
    %45 = arith.addf %42, %44 : vector<64x128xf32>
    %cst_34 = arith.constant 0.00999999977 : f32
    %46 = vector.broadcast %cst_34 : f32 to vector<64x128xf32>
    %47 = arith.mulf %46, %45 : vector<64x128xf32>
    %48 = arith.maximumf %45, %47 : vector<64x128xf32>
    %49 = arith.truncf %48 : vector<64x128xf32> to vector<64x128xbf16>
    %c0_35 = arith.constant 0 : index
    %c0_36 = arith.constant 0 : index
    %50 = vector.load %arg14[%c0_35, %c0_36] : memref<64x64xbf16, #tpu.memory_space<vmem>>, vector<64x64xbf16>
    %cst_37 = arith.constant dense<0.000000e+00> : vector<64x128xf32>
    %51 = tpu.matmul %50, %49, %cst_37 {dimension_numbers = #tpu.dot_dimension_numbers<[1], [0], [0], [1], [0, 0, 1, 1], [], []>} : vector<64x64xbf16>, vector<64x128xbf16>, vector<64x128xf32> -> vector<64x128xf32>
    %c0_38 = arith.constant 0 : index
    %c0_39 = arith.constant 0 : index
    %52 = vector.load %arg15[%c0_38, %c0_39] : memref<64x1xf32, #tpu.memory_space<vmem>>, vector<64x1xf32>
    %53 = vector.broadcast %52 : vector<64x1xf32> to vector<64x128xf32>
    %54 = arith.addf %51, %53 : vector<64x128xf32>
    %cst_40 = arith.constant 0.00999999977 : f32
    %55 = vector.broadcast %cst_40 : f32 to vector<64x128xf32>
    %56 = arith.mulf %55, %54 : vector<64x128xf32>
    %57 = arith.maximumf %54, %56 : vector<64x128xf32>
    %58 = arith.truncf %57 : vector<64x128xf32> to vector<64x128xbf16>
    %c0_41 = arith.constant 0 : index
    %c0_42 = arith.constant 0 : index
    %59 = vector.load %arg16[%c0_41, %c0_42] : memref<32x64xbf16, #tpu.memory_space<vmem>>, vector<32x64xbf16>
    %cst_43 = arith.constant dense<0.000000e+00> : vector<32x128xf32>
    %60 = tpu.matmul %59, %58, %cst_43 {dimension_numbers = #tpu.dot_dimension_numbers<[1], [0], [0], [1], [0, 0, 1, 1], [], []>} : vector<32x64xbf16>, vector<64x128xbf16>, vector<32x128xf32> -> vector<32x128xf32>
    %c0_44 = arith.constant 0 : index
    %c0_45 = arith.constant 0 : index
    %61 = vector.load %arg17[%c0_44, %c0_45] : memref<32x1xf32, #tpu.memory_space<vmem>>, vector<32x1xf32>
    %62 = vector.broadcast %61 : vector<32x1xf32> to vector<32x128xf32>
    %63 = arith.addf %60, %62 : vector<32x128xf32>
    %cst_46 = arith.constant 0.00999999977 : f32
    %64 = vector.broadcast %cst_46 : f32 to vector<32x128xf32>
    %65 = arith.mulf %64, %63 : vector<32x128xf32>
    %66 = arith.maximumf %63, %65 : vector<32x128xf32>
    %67 = arith.truncf %66 : vector<32x128xf32> to vector<32x128xbf16>
    %c0_47 = arith.constant 0 : index
    %c0_48 = arith.constant 0 : index
    %68 = vector.load %arg18[%c0_47, %c0_48] : memref<16x32xbf16, #tpu.memory_space<vmem>>, vector<16x32xbf16>
    %cst_49 = arith.constant dense<0.000000e+00> : vector<16x128xf32>
    %69 = tpu.matmul %68, %67, %cst_49 {dimension_numbers = #tpu.dot_dimension_numbers<[1], [0], [0], [1], [0, 0, 1, 1], [], []>} : vector<16x32xbf16>, vector<32x128xbf16>, vector<16x128xf32> -> vector<16x128xf32>
    %c0_50 = arith.constant 0 : index
    %c0_51 = arith.constant 0 : index
    %70 = vector.load %arg19[%c0_50, %c0_51] : memref<16x1xf32, #tpu.memory_space<vmem>>, vector<16x1xf32>
    %71 = vector.broadcast %70 : vector<16x1xf32> to vector<16x128xf32>
    %72 = arith.addf %69, %71 : vector<16x128xf32>
    %cst_52 = arith.constant 0.00999999977 : f32
    %73 = vector.broadcast %cst_52 : f32 to vector<16x128xf32>
    %74 = arith.mulf %73, %72 : vector<16x128xf32>
    %75 = arith.maximumf %72, %74 : vector<16x128xf32>
    %76 = arith.truncf %75 : vector<16x128xf32> to vector<16x128xbf16>
    %c0_53 = arith.constant 0 : index
    %c0_54 = arith.constant 0 : index
    %77 = vector.load %arg20[%c0_53, %c0_54] : memref<1x16xbf16, #tpu.memory_space<vmem>>, vector<1x16xbf16>
    %cst_55 = arith.constant dense<0.000000e+00> : vector<1x128xf32>
    %78 = tpu.matmul %77, %76, %cst_55 {dimension_numbers = #tpu.dot_dimension_numbers<[1], [0], [0], [1], [0, 0, 1, 1], [], []>} : vector<1x16xbf16>, vector<16x128xbf16>, vector<1x128xf32> -> vector<1x128xf32>
    %c0_56 = arith.constant 0 : index
    %c0_57 = arith.constant 0 : index
    %79 = vector.load %arg21[%c0_56, %c0_57] : memref<1x1xf32, #tpu.memory_space<vmem>>, vector<1x1xf32>
    %80 = vector.broadcast %79 : vector<1x1xf32> to vector<1x128xf32>
    %81 = arith.addf %78, %80 : vector<1x128xf32>
    %c0_58 = arith.constant 0 : index
    %c0_59 = arith.constant 0 : index
    %82 = vector.load %arg22[%c0_58, %c0_59] : memref<1x128xf32, #tpu.memory_space<vmem>>, vector<1x128xf32>
    tpu.vector_store %arg22[%c0_58, %c0_59], %81 {strides = array<i32>} : memref<1x128xf32, #tpu.memory_space<vmem>>, vector<1x128xf32>,
    return
  }
  func.func @transform_0(%arg0: i32) -> (i32, i32) {
    %c0_i32 = arith.constant 0 : i32
    %c0_i32_0 = arith.constant 0 : i32
    return %arg0, %c0_i32 : i32, i32
  }
  func.func @transform_1(%arg0: i32) -> (i32, i32) {
    %c0_i32 = arith.constant 0 : i32
    %c0_i32_0 = arith.constant 0 : i32
    return %arg0, %c0_i32 : i32, i32
  }
  func.func @transform_2(%arg0: i32) -> (i32, i32) {
    %c0_i32 = arith.constant 0 : i32
    %c0_i32_0 = arith.constant 0 : i32
    %c0_i32_1 = arith.constant 0 : i32
    return %c0_i32, %c0_i32_0 : i32, i32
  }
  func.func @transform_3(%arg0: i32) -> (i32, i32) {
    %c0_i32 = arith.constant 0 : i32
    %c0_i32_0 = arith.constant 0 : i32
    %c0_i32_1 = arith.constant 0 : i32
    return %c0_i32, %c0_i32_0 : i32, i32
  }
  func.func @transform_4(%arg0: i32) -> (i32, i32) {
    %c0_i32 = arith.constant 0 : i32
    %c0_i32_0 = arith.constant 0 : i32
    %c0_i32_1 = arith.constant 0 : i32
    return %c0_i32, %c0_i32_0 : i32, i32
  }
  func.func @transform_5(%arg0: i32) -> (i32, i32) {
    %c0_i32 = arith.constant 0 : i32
    %c0_i32_0 = arith.constant 0 : i32
    %c0_i32_1 = arith.constant 0 : i32
    return %c0_i32, %c0_i32_0 : i32, i32
  }
  func.func @transform_6(%arg0: i32) -> (i32, i32) {
    %c0_i32 = arith.constant 0 : i32
    %c0_i32_0 = arith.constant 0 : i32
    %c0_i32_1 = arith.constant 0 : i32
    return %c0_i32, %c0_i32_0 : i32, i32
  }
  func.func @transform_7(%arg0: i32) -> (i32, i32) {
    %c0_i32 = arith.constant 0 : i32
    %c0_i32_0 = arith.constant 0 : i32
    %c0_i32_1 = arith.constant 0 : i32
    return %c0_i32, %c0_i32_0 : i32, i32
  }
  func.func @transform_8(%arg0: i32) -> (i32, i32) {
    %c0_i32 = arith.constant 0 : i32
    %c0_i32_0 = arith.constant 0 : i32
    %c0_i32_1 = arith.constant 0 : i32
    return %c0_i32, %c0_i32_0 : i32, i32
  }
  func.func @transform_9(%arg0: i32) -> (i32, i32) {
    %c0_i32 = arith.constant 0 : i32
    %c0_i32_0 = arith.constant 0 : i32
    %c0_i32_1 = arith.constant 0 : i32
    return %c0_i32, %c0_i32_0 : i32, i32
  }
  func.func @transform_10(%arg0: i32) -> (i32, i32) {
    %c0_i32 = arith.constant 0 : i32
    %c0_i32_0 = arith.constant 0 : i32
    %c0_i32_1 = arith.constant 0 : i32
    return %c0_i32, %c0_i32_0 : i32, i32
  }
  func.func @transform_11(%arg0: i32) -> (i32, i32) {
    %c0_i32 = arith.constant 0 : i32
    %c0_i32_0 = arith.constant 0 : i32
    %c0_i32_1 = arith.constant 0 : i32
    return %c0_i32, %c0_i32_0 : i32, i32
  }
  func.func @transform_12(%arg0: i32) -> (i32, i32) {
    %c0_i32 = arith.constant 0 : i32
    %c0_i32_0 = arith.constant 0 : i32
    %c0_i32_1 = arith.constant 0 : i32
    return %c0_i32, %c0_i32_0 : i32, i32
  }
  func.func @transform_13(%arg0: i32) -> (i32, i32) {
    %c0_i32 = arith.constant 0 : i32
    %c0_i32_0 = arith.constant 0 : i32
    %c0_i32_1 = arith.constant 0 : i32
    return %c0_i32, %c0_i32_0 : i32, i32
  }
  func.func @transform_14(%arg0: i32) -> (i32, i32) {
    %c0_i32 = arith.constant 0 : i32
    %c0_i32_0 = arith.constant 0 : i32
    %c0_i32_1 = arith.constant 0 : i32
    return %c0_i32, %c0_i32_0 : i32, i32
  }
  func.func @transform_15(%arg0: i32) -> (i32, i32) {
    %c0_i32 = arith.constant 0 : i32
    %c0_i32_0 = arith.constant 0 : i32
    %c0_i32_1 = arith.constant 0 : i32
    return %c0_i32, %c0_i32_0 : i32, i32
  }
  func.func @transform_16(%arg0: i32) -> (i32, i32) {
    %c0_i32 = arith.constant 0 : i32
    %c0_i32_0 = arith.constant 0 : i32
    %c0_i32_1 = arith.constant 0 : i32
    return %c0_i32, %c0_i32_0 : i32, i32
  }
  func.func @transform_17(%arg0: i32) -> (i32, i32) {
    %c0_i32 = arith.constant 0 : i32
    %c0_i32_0 = arith.constant 0 : i32
    %c0_i32_1 = arith.constant 0 : i32
    return %c0_i32, %c0_i32_0 : i32, i32
  }
  func.func @transform_18(%arg0: i32) -> (i32, i32) {
    %c0_i32 = arith.constant 0 : i32
    %c0_i32_0 = arith.constant 0 : i32
    %c0_i32_1 = arith.constant 0 : i32
    return %c0_i32, %c0_i32_0 : i32, i32
  }
  func.func @transform_19(%arg0: i32) -> (i32, i32) {
    %c0_i32 = arith.constant 0 : i32
    %c0_i32_0 = arith.constant 0 : i32
    %c0_i32_1 = arith.constant 0 : i32
    return %c0_i32, %c0_i32_0 : i32, i32
  }
  func.func @transform_20(%arg0: i32) -> (i32, i32) {
    %c0_i32 = arith.constant 0 : i32
    %c0_i32_0 = arith.constant 0 : i32
    %c0_i32_1 = arith.constant 0 : i32
    return %c0_i32, %c0_i32_0 : i32, i32
  }
  func.func @transform_21(%arg0: i32) -> (i32, i32) {
    %c0_i32 = arith.constant 0 : i32
    %c0_i32_0 = arith.constant 0 : i32
    return %c0_i32, %arg0 : i32, i32
  }
}

</mosaic_0001>

<llo_original>
// kernel: two_tower_forward.1
$region0: #{two_tower_forward.1}
  #allocation0 [shape = 'u32[]', space=smem, size = 0x4, offset = 0x4, fixed_abs, tag = 'smem constant byte address 0x4 - core index']
  #allocation1 [shape = 'u32[144,128]{1,0:T(1,128)}', space=vmem, size = 0x12000, scoped, tag = 'internal scratch']
  #allocation2 [shape = 'f32[1,1]{1,0:T(1,128)S(1)}', space=vmem, size = 0x200, scoped, tag = 'scoped memory for two_tower_forward.1']
  %s0 = inlined_call_operand.vmem [shape: bf16[128,32], index: 0, kind: input, shape index: {}]
  %s1 = inlined_call_operand.vmem [shape: bf16[128,32], index: 1, kind: input, shape index: {}]
  %s2 = inlined_call_operand.vmem [shape: bf16[64,32], index: 2, kind: input, shape index: {}]
  %s3 = inlined_call_operand.vmem [shape: f32[64,1], index: 3, kind: input, shape index: {}]
  %s4 = inlined_call_operand.vmem [shape: bf16[32,64], index: 4, kind: input, shape index: {}]
  %s5 = inlined_call_operand.vmem [shape: f32[32,1], index: 5, kind: input, shape index: {}]
  %s6 = inlined_call_operand.vmem [shape: bf16[64,32], index: 6, kind: input, shape index: {}]
  %s7 = inlined_call_operand.vmem [shape: f32[64,1], index: 7, kind: input, shape index: {}]
  %s8 = inlined_call_operand.vmem [shape: bf16[32,64], index: 8, kind: input, shape index: {}]
  %s9 = inlined_call_operand.vmem [shape: f32[32,1], index: 9, kind: input, shape index: {}]
  %s10 = inlined_call_operand.vmem [shape: bf16[64,32], index: 10, kind: input, shape index: {}]
  %s11 = inlined_call_operand.vmem [shape: bf16[64,32], index: 11, kind: input, shape index: {}]
  %s12 = inlined_call_operand.vmem [shape: f32[64,1], index: 12, kind: input, shape index: {}]
  %s13 = inlined_call_operand.vmem [shape: bf16[64,64], index: 13, kind: input, shape index: {}]
  %s14 = inlined_call_operand.vmem [shape: f32[64,1], index: 14, kind: input, shape index: {}]
  %s15 = inlined_call_operand.vmem [shape: bf16[32,64], index: 15, kind: input, shape index: {}]
  %s16 = inlined_call_operand.vmem [shape: f32[32,1], index: 16, kind: input, shape index: {}]
  %s17 = inlined_call_operand.vmem [shape: bf16[16,32], index: 17, kind: input, shape index: {}]
  %s18 = inlined_call_operand.vmem [shape: f32[16,1], index: 18, kind: input, shape index: {}]
  %s19 = inlined_call_operand.vmem [shape: bf16[1,16], index: 19, kind: input, shape index: {}]
  %s20 = inlined_call_operand.<no memory space> [shape: f32[1,1], index: 20, kind: input, shape index: {}]
  %s21 = inlined_call_operand.vmem [shape: f32[1,128], index: 21, kind: output, shape index: {}]
  %s22 = sld [smem:[#allocation0]]
  $region94: #{two_tower_forward.1} parent=0
    _
  %s24 = ssub.s32 1, %s22
  %s25 = scalar_select 0, %s24, %s22
  %v26 = vstv %s20
  %27 = vst [vmem:[#allocation2] sm:$0x1] %v26
  // Predicated region
  $region2: #{two_tower_forward.1} parent=0 // pred_check
    _
  $region3: #{two_tower_forward.1} parent=0 // pred_check_branch
    %29 = sbr.rel (0) target = $region5
  $region4: #{two_tower_forward.1} parent=0 // pred_region
    _
  $region5: #{two_tower_forward.1} parent=0 // pred_fallthru
    _
  // Predicated region
  $region6: #{two_tower_forward.1} parent=0 // pred_check
    _
  $region7: #{two_tower_forward.1} parent=0 // pred_check_branch
    %31 = sbr.rel (0) target = $region9
  $region8: #{two_tower_forward.1} parent=0 // pred_region
    _
  $region9: #{two_tower_forward.1} parent=0 // pred_fallthru
    _
  // Predicated region
  $region10: #{two_tower_forward.1} parent=0 // pred_check
    _
  $region11: #{two_tower_forward.1} parent=0 // pred_check_branch
    %33 = sbr.rel (0) target = $region13
  $region12: #{two_tower_forward.1} parent=0 // pred_region
    _
  $region13: #{two_tower_forward.1} parent=0 // pred_fallthru
    _
  // Predicated region
  $region14: #{two_tower_forward.1} parent=0 // pred_check
    _
  $region15: #{two_tower_forward.1} parent=0 // pred_check_branch
    %35 = sbr.rel (0) target = $region17
  $region16: #{two_tower_forward.1} parent=0 // pred_region
    _
  $region17: #{two_tower_forward.1} parent=0 // pred_fallthru
    _
  // Predicated region
  $region18: #{two_tower_forward.1} parent=0 // pred_check
    _
  $region19: #{two_tower_forward.1} parent=0 // pred_check_branch
    %37 = sbr.rel (0) target = $region21
  $region20: #{two_tower_forward.1} parent=0 // pred_region
    _
  $region21: #{two_tower_forward.1} parent=0 // pred_fallthru
    _
  // Predicated region
  $region22: #{two_tower_forward.1} parent=0 // pred_check
    _
  $region23: #{two_tower_forward.1} parent=0 // pred_check_branch
    %39 = sbr.rel (0) target = $region25
  $region24: #{two_tower_forward.1} parent=0 // pred_region
    _
  $region25: #{two_tower_forward.1} parent=0 // pred_fallthru
    _
  // Predicated region
  $region26: #{two_tower_forward.1} parent=0 // pred_check
    _
  $region27: #{two_tower_forward.1} parent=0 // pred_check_branch
    %41 = sbr.rel (0) target = $region29
  $region28: #{two_tower_forward.1} parent=0 // pred_region
    _
  $region29: #{two_tower_forward.1} parent=0 // pred_fallthru
    _
  // Predicated region
  $region30: #{two_tower_forward.1} parent=0 // pred_check
    _
  $region31: #{two_tower_forward.1} parent=0 // pred_check_branch
    %43 = sbr.rel (0) target = $region33
  $region32: #{two_tower_forward.1} parent=0 // pred_region
    _
  $region33: #{two_tower_forward.1} parent=0 // pred_fallthru
    _
  // Predicated region
  $region34: #{two_tower_forward.1} parent=0 // pred_check
    _
  $region35: #{two_tower_forward.1} parent=0 // pred_check_branch
    %45 = sbr.rel (0) target = $region37
  $region36: #{two_tower_forward.1} parent=0 // pred_region
    _
  $region37: #{two_tower_forward.1} parent=0 // pred_fallthru
    _
  // Predicated region
  $region38: #{two_tower_forward.1} parent=0 // pred_check
    _
  $region39: #{two_tower_forward.1} parent=0 // pred_check_branch
    %47 = sbr.rel (0) target = $region41
  $region40: #{two_tower_forward.1} parent=0 // pred_region
    _
  $region41: #{two_tower_forward.1} parent=0 // pred_fallthru
    _
  // Predicated region
  $region42: #{two_tower_forward.1} parent=0 // pred_check
    _
  $region43: #{two_tower_forward.1} parent=0 // pred_check_branch
    %49 = sbr.rel (0) target = $region45
  $region44: #{two_tower_forward.1} parent=0 // pred_region
    _
  $region45: #{two_tower_forward.1} parent=0 // pred_fallthru
    _
  // Predicated region
  $region46: #{two_tower_forward.1} parent=0 // pred_check
    _
  $region47: #{two_tower_forward.1} parent=0 // pred_check_branch
    %51 = sbr.rel (0) target = $region49
  $region48: #{two_tower_forward.1} parent=0 // pred_region
    _
  $region49: #{two_tower_forward.1} parent=0 // pred_fallthru
    _
  // Predicated region
  $region50: #{two_tower_forward.1} parent=0 // pred_check
    _
  $region51: #{two_tower_forward.1} parent=0 // pred_check_branch
    %53 = sbr.rel (0) target = $region53
  $region52: #{two_tower_forward.1} parent=0 // pred_region
    _
  $region53: #{two_tower_forward.1} parent=0 // pred_fallthru
    _
  // Predicated region
  $region54: #{two_tower_forward.1} parent=0 // pred_check
    _
  $region55: #{two_tower_forward.1} parent=0 // pred_check_branch
    %55 = sbr.rel (0) target = $region57
  $region56: #{two_tower_forward.1} parent=0 // pred_region
    _
  $region57: #{two_tower_forward.1} parent=0 // pred_fallthru
    _
  // Predicated region
  $region58: #{two_tower_forward.1} parent=0 // pred_check
    _
  $region59: #{two_tower_forward.1} parent=0 // pred_check_branch
    %57 = sbr.rel (0) target = $region61
  $region60: #{two_tower_forward.1} parent=0 // pred_region
    _
  $region61: #{two_tower_forward.1} parent=0 // pred_fallthru
    _
  // Predicated region
  $region62: #{two_tower_forward.1} parent=0 // pred_check
    _
  $region63: #{two_tower_forward.1} parent=0 // pred_check_branch
    %59 = sbr.rel (0) target = $region65
  $region64: #{two_tower_forward.1} parent=0 // pred_region
    _
  $region65: #{two_tower_forward.1} parent=0 // pred_fallthru
    _
  // Predicated region
  $region66: #{two_tower_forward.1} parent=0 // pred_check
    _
  $region67: #{two_tower_forward.1} parent=0 // pred_check_branch
    %61 = sbr.rel (0) target = $region69
  $region68: #{two_tower_forward.1} parent=0 // pred_region
    _
  $region69: #{two_tower_forward.1} parent=0 // pred_fallthru
    _
  // Predicated region
  $region70: #{two_tower_forward.1} parent=0 // pred_check
    _
  $region71: #{two_tower_forward.1} parent=0 // pred_check_branch
    %63 = sbr.rel (0) target = $region73
  $region72: #{two_tower_forward.1} parent=0 // pred_region
    _
  $region73: #{two_tower_forward.1} parent=0 // pred_fallthru
    _
  // Predicated region
  $region74: #{two_tower_forward.1} parent=0 // pred_check
    _
  $region75: #{two_tower_forward.1} parent=0 // pred_check_branch
    %65 = sbr.rel (0) target = $region77
  $region76: #{two_tower_forward.1} parent=0 // pred_region
    _
  $region77: #{two_tower_forward.1} parent=0 // pred_fallthru
    _
  // Predicated region
  $region78: #{two_tower_forward.1} parent=0 // pred_check
    _
  $region79: #{two_tower_forward.1} parent=0 // pred_check_branch
    %67 = sbr.rel (0) target = $region81
  $region80: #{two_tower_forward.1} parent=0 // pred_region
    _
  $region81: #{two_tower_forward.1} parent=0 // pred_fallthru
    _
  // Predicated region
  $region82: #{two_tower_forward.1} parent=0 // pred_check
    _
  $region83: #{two_tower_forward.1} parent=0 // pred_check_branch
    %69 = sbr.rel (0) target = $region85
  $region84: #{two_tower_forward.1} parent=0 // pred_region
    _
  $region85: #{two_tower_forward.1} parent=0 // pred_fallthru
    _
  %v71 = vld [vmem:[%s0] sm:$0xf]
  %v72 = vld [vmem:[%s0 + $0x4] sm:$0xf]
  %v73 = vld [vmem:[%s0 + $0x8] sm:$0xf]
  %v74 = vld [vmem:[%s0 + $0xc] sm:$0xf]
  %v75 = vld [vmem:[%s0 + $0x10] sm:$0xf]
  %v76 = vld [vmem:[%s0 + $0x14] sm:$0xf]
  %v77 = vld [vmem:[%s0 + $0x18] sm:$0xf]
  %v78 = vld [vmem:[%s0 + $0x1c] sm:$0xf]
  %v79 = vld [vmem:[%s0 + $0x20] sm:$0xf]
  %v80 = vld [vmem:[%s0 + $0x24] sm:$0xf]
  %v81 = vld [vmem:[%s0 + $0x28] sm:$0xf]
  %v82 = vld [vmem:[%s0 + $0x2c] sm:$0xf]
  %v83 = vld [vmem:[%s0 + $0x30] sm:$0xf]
  %v84 = vld [vmem:[%s0 + $0x34] sm:$0xf]
  %v85 = vld [vmem:[%s0 + $0x38] sm:$0xf]
  %v86 = vld [vmem:[%s0 + $0x3c] sm:$0xf]
  %v87 = vld [vmem:[%s1] sm:$0xf]
  %v88 = vld [vmem:[%s1 + $0x4] sm:$0xf]
  %v89 = vld [vmem:[%s1 + $0x8] sm:$0xf]
  %v90 = vld [vmem:[%s1 + $0xc] sm:$0xf]
  %v91 = vld [vmem:[%s1 + $0x10] sm:$0xf]
  %v92 = vld [vmem:[%s1 + $0x14] sm:$0xf]
  %v93 = vld [vmem:[%s1 + $0x18] sm:$0xf]
  %v94 = vld [vmem:[%s1 + $0x1c] sm:$0xf]
  %v95 = vld [vmem:[%s1 + $0x20] sm:$0xf]
  %v96 = vld [vmem:[%s1 + $0x24] sm:$0xf]
  %v97 = vld [vmem:[%s1 + $0x28] sm:$0xf]
  %v98 = vld [vmem:[%s1 + $0x2c] sm:$0xf]
  %v99 = vld [vmem:[%s1 + $0x30] sm:$0xf]
  %v100 = vld [vmem:[%s1 + $0x34] sm:$0xf]
  %v101 = vld [vmem:[%s1 + $0x38] sm:$0xf]
  %v102 = vld [vmem:[%s1 + $0x3c] sm:$0xf]
  %v103 = vld [vmem:[%s2] sm:$0xf]
  %v104 = vld [vmem:[%s2 + $0x4] sm:$0xf]
  %v105 = vld [vmem:[%s2 + $0x8] sm:$0xf]
  %v106 = vld [vmem:[%s2 + $0xc] sm:$0xf]
  %v107 = vld [vmem:[%s2 + $0x10] sm:$0xf]
  %v108 = vld [vmem:[%s2 + $0x14] sm:$0xf]
  %v109 = vld [vmem:[%s2 + $0x18] sm:$0xf]
  %v110 = vld [vmem:[%s2 + $0x1c] sm:$0xf]
  %v111 = vld [vmem:[%s3] sm:$0xff]
  %v112 = vld [vmem:[%s3 + $0x8] sm:$0xff]
  %v113 = vld [vmem:[%s3 + $0x10] sm:$0xff]
  %v114 = vld [vmem:[%s3 + $0x18] sm:$0xff]
  %v115 = vld [vmem:[%s3 + $0x20] sm:$0xff]
  %v116 = vld [vmem:[%s3 + $0x28] sm:$0xff]
  %v117 = vld [vmem:[%s3 + $0x30] sm:$0xff]
  %v118 = vld [vmem:[%s3 + $0x38] sm:$0xff]
  %120 = vset.pattern.permute.xlu0 0
  %121 = vperm.xlu0 %120, %v111
  %v122 = vpop.permute.xlu0 %121
  %125 = vset.pattern.permute.xlu0 0
  %126 = vperm.xlu0 %125, %v112
  %v127 = vpop.permute.xlu0 %126
  %130 = vset.pattern.permute.xlu0 0
  %131 = vperm.xlu0 %130, %v113
  %v132 = vpop.permute.xlu0 %131
  %135 = vset.pattern.permute.xlu0 0
  %136 = vperm.xlu0 %135, %v114
  %v137 = vpop.permute.xlu0 %136
  %140 = vset.pattern.permute.xlu0 0
  %141 = vperm.xlu0 %140, %v115
  %v142 = vpop.permute.xlu0 %141
  %145 = vset.pattern.permute.xlu0 0
  %146 = vperm.xlu0 %145, %v116
  %v147 = vpop.permute.xlu0 %146
  %150 = vset.pattern.permute.xlu0 0
  %151 = vperm.xlu0 %150, %v117
  %v152 = vpop.permute.xlu0 %151
  %155 = vset.pattern.permute.xlu0 0
  %156 = vperm.xlu0 %155, %v118
  %v157 = vpop.permute.xlu0 %156
  %v167 = vunpack.c.l.b16 %v103
  %v168 = vunpack.c.l.b16 %v104
  %v169 = vunpack.c.l.b16 %v105
  %v170 = vunpack.c.l.b16 %v106
  %v171 = vunpack.c.l.b16 %v107
  %v172 = vunpack.c.l.b16 %v108
  %v173 = vunpack.c.l.b16 %v109
  %v174 = vunpack.c.l.b16 %v110
  %v175 = vpack.c.b16 %v168, %v167
  %v176 = vpack.c.b16 %v170, %v169
  %v177 = vpack.c.b16 %v172, %v171
  %v178 = vpack.c.b16 %v174, %v173
  %v195 = vunpack.c.l.b16 %v71
  %v196 = vunpack.c.l.b16 %v72
  %v197 = vunpack.c.l.b16 %v73
  %v198 = vunpack.c.l.b16 %v74
  %v199 = vunpack.c.l.b16 %v75
  %v200 = vunpack.c.l.b16 %v76
  %v201 = vunpack.c.l.b16 %v77
  %v202 = vunpack.c.l.b16 %v78
  %v203 = vunpack.c.l.b16 %v79
  %v204 = vunpack.c.l.b16 %v80
  %v205 = vunpack.c.l.b16 %v81
  %v206 = vunpack.c.l.b16 %v82
  %v207 = vunpack.c.l.b16 %v83
  %v208 = vunpack.c.l.b16 %v84
  %v209 = vunpack.c.l.b16 %v85
  %v210 = vunpack.c.l.b16 %v86
  %v211 = vpack.c.b16 %v196, %v195
  %v212 = vpack.c.b16 %v198, %v197
  %v213 = vpack.c.b16 %v200, %v199
  %v214 = vpack.c.b16 %v202, %v201
  %v215 = vpack.c.b16 %v204, %v203
  %v216 = vpack.c.b16 %v206, %v205
  %v217 = vpack.c.b16 %v208, %v207
  %v218 = vpack.c.b16 %v210, %v209
  %vm219 = vcmask 261120
  %v221 = vsel %vm219, %v175, 0
  %v224 = vsel %vm219, %v176, 0
  %v227 = vsel %vm219, %v177, 0
  %v230 = vsel %vm219, %v178, 0
  %v233 = vsel %vm219, %v211, 0
  %v236 = vsel %vm219, %v212, 0
  %v239 = vsel %vm219, %v213, 0
  %v242 = vsel %vm219, %v214, 0
  %v245 = vsel %vm219, %v215, 0
  %v248 = vsel %vm219, %v216, 0
  %v251 = vsel %vm219, %v217, 0
  %v254 = vsel %vm219, %v218, 0
  %256 = vmatprep.subr.bf16.mxu0 0
  %257 = vmatpush1.bf16.xpose.msra.mxu0 %v233
  %258 = vmatprep.subr.bf16.mxu0 0
  %259 = vmatpush1.bf16.xpose.msra.mxu0 %v236
  %260 = vmatprep.subr.bf16.mxu0 0
  %261 = vmatpush1.bf16.xpose.msra.mxu0 %v239
  %262 = vmatprep.subr.bf16.mxu0 0
  %263 = vmatpush1.bf16.xpose.msra.mxu0 %v242
  %264 = vmatprep.subr.bf16.mxu0 0
  %265 = vmatpush1.bf16.xpose.msra.mxu0 %v245
  %266 = vmatprep.subr.bf16.mxu0 0
  %267 = vmatpush1.bf16.xpose.msra.mxu0 %v248
  %268 = vmatprep.subr.bf16.mxu0 0
  %269 = vmatpush1.bf16.xpose.msra.mxu0 %v251
  %270 = vmatprep.subr.bf16.mxu0 0
  %271 = vmatpush1.bf16.xpose.msra.mxu0 %v254
  %272 = vmatprep.subr.bf16.mxu0 0
  %273 = vmatpush1.bf16.xpose.msra.mxu0 0
  %274 = vmatprep.subr.bf16.mxu0 0
  %275 = vmatpush1.bf16.xpose.msra.mxu0 0
  %276 = vmatprep.subr.bf16.mxu0 0
  %277 = vmatpush1.bf16.xpose.msra.mxu0 0
  %278 = vmatprep.subr.bf16.mxu0 0
  %279 = vmatpush1.bf16.xpose.msra.mxu0 0
  %280 = vmatprep.subr.bf16.mxu0 0
  %281 = vmatpush1.bf16.xpose.msra.mxu0 0
  %282 = vmatprep.subr.bf16.mxu0 0
  %283 = vmatpush1.bf16.xpose.msra.mxu0 0
  %284 = vmatprep.subr.bf16.mxu0 0
  %285 = vmatpush1.bf16.xpose.msra.mxu0 0
  %286 = vmatprep.subr.bf16.mxu0 0
  %287 = vmatpush1.bf16.xpose.msra.mxu0 0
  %288 = vmatprep.mubr.bf16.mxu0 0
  %289 = vmatmul.mubr.bf16.gmra.mrb[0].mxu0 %v221
  %v290 = vpop.f32.mrb[0].mxu0
  %v291 = vadd.f32 %v122, %v290
  %v292 = vpop.f32.mrb[0].mxu0
  %v293 = vpop.f32.mrb[0].mxu0
  %v294 = vadd.f32 %v127, %v293
  %v295 = vpop.f32.mrb[0].mxu0
  %296 = vmatprep.mubr.bf16.mxu0 0
  %297 = vmatmul.mubr.bf16.gmra.mrb[0].mxu0 %v224
  %v298 = vpop.f32.mrb[0].mxu0
  %v299 = vadd.f32 %v132, %v298
  %v300 = vpop.f32.mrb[0].mxu0
  %v301 = vpop.f32.mrb[0].mxu0
  %v302 = vadd.f32 %v137, %v301
  %v303 = vpop.f32.mrb[0].mxu0
  %304 = vmatprep.mubr.bf16.mxu0 0
  %305 = vmatmul.mubr.bf16.gmra.mrb[0].mxu0 %v227
  %v306 = vpop.f32.mrb[0].mxu0
  %v307 = vadd.f32 %v142, %v306
  %v308 = vpop.f32.mrb[0].mxu0
  %v309 = vpop.f32.mrb[0].mxu0
  %v310 = vadd.f32 %v147, %v309
  %v311 = vpop.f32.mrb[0].mxu0
  %312 = vmatprep.mubr.bf16.mxu0 0
  %313 = vmatmul.mubr.bf16.gmra.mrb[0].mxu0 %v230
  %v314 = vpop.f32.mrb[0].mxu0
  %v315 = vadd.f32 %v152, %v314
  %v316 = vpop.f32.mrb[0].mxu0
  %v317 = vpop.f32.mrb[0].mxu0
  %v318 = vadd.f32 %v157, %v317
  %v319 = vpop.f32.mrb[0].mxu0
  %320 = vdwg.mxu0
  %v321 = vmul.f32 %v291, 0.01
  %v322 = vmul.f32 %v294, 0.01
  %v323 = vmul.f32 %v299, 0.01
  %v324 = vmul.f32 %v302, 0.01
  %v325 = vmul.f32 %v307, 0.01
  %v326 = vmul.f32 %v310, 0.01
  %v327 = vmul.f32 %v315, 0.01
  %v328 = vmul.f32 %v318, 0.01
  %v329 = vmax.f32 %v291, %v321
  %v330 = vmax.f32 %v294, %v322
  %v331 = vmax.f32 %v299, %v323
  %v332 = vmax.f32 %v302, %v324
  %v333 = vmax.f32 %v307, %v325
  %v334 = vmax.f32 %v310, %v326
  %v335 = vmax.f32 %v315, %v327
  %v336 = vmax.f32 %v318, %v328
  %v337 = vpack.c.bf16 %v330, %v329
  %v338 = vpack.c.bf16 %v332, %v331
  %v339 = vpack.c.bf16 %v334, %v333
  %v340 = vpack.c.bf16 %v336, %v335
  %v341 = vld [vmem:[%s4] sm:$0xf]
  %v342 = vld [vmem:[%s4 + $0x4] sm:$0xf]
  %v343 = vld [vmem:[%s4 + $0x8] sm:$0xf]
  %v344 = vld [vmem:[%s4 + $0xc] sm:$0xf]
  %v345 = vld [vmem:[%s5] sm:$0xff]
  %v346 = vld [vmem:[%s5 + $0x8] sm:$0xff]
  %v347 = vld [vmem:[%s5 + $0x10] sm:$0xff]
  %v348 = vld [vmem:[%s5 + $0x18] sm:$0xff]
  %350 = vset.pattern.permute.xlu0 0
  %351 = vperm.xlu0 %350, %v345
  %v352 = vpop.permute.xlu0 %351
  %355 = vset.pattern.permute.xlu0 0
  %356 = vperm.xlu0 %355, %v346
  %v357 = vpop.permute.xlu0 %356
  %360 = vset.pattern.permute.xlu0 0
  %361 = vperm.xlu0 %360, %v347
  %v362 = vpop.permute.xlu0 %361
  %365 = vset.pattern.permute.xlu0 0
  %366 = vperm.xlu0 %365, %v348
  %v367 = vpop.permute.xlu0 %366
  %v373 = vunpack.c.l.b16 %v341
  %v374 = vunpack.c.l.b16 %v342
  %v375 = vunpack.c.l.b16 %v343
  %v376 = vunpack.c.l.b16 %v344
  %v377 = vpack.c.b16 %v374, %v373
  %v378 = vpack.c.b16 %v376, %v375
  %vm379 = vcmask 523264
  %v381 = vsel %vm379, %v377, 0
  %v384 = vsel %vm379, %v378, 0
  %386 = vmatprep.subr.bf16.mxu0 0
  %387 = vmatpush1.bf16.msra.mxu0 %v337
  %388 = vmatprep.subr.bf16.mxu0 0
  %389 = vmatpush1.bf16.msra.mxu0 %v338
  %390 = vmatprep.subr.bf16.mxu0 0
  %391 = vmatpush1.bf16.msra.mxu0 %v339
  %392 = vmatprep.subr.bf16.mxu0 0
  %393 = vmatpush1.bf16.msra.mxu0 %v340
  %394 = vmatprep.subr.bf16.mxu0 0
  %395 = vmatpush1.bf16.msra.mxu0 0
  %396 = vmatprep.subr.bf16.mxu0 0
  %397 = vmatpush1.bf16.msra.mxu0 0
  %398 = vmatprep.subr.bf16.mxu0 0
  %399 = vmatpush1.bf16.msra.mxu0 0
  %400 = vmatprep.subr.bf16.mxu0 0
  %401 = vmatpush1.bf16.msra.mxu0 0
  %402 = vmatprep.subr.bf16.mxu0 0
  %403 = vmatpush1.bf16.msra.mxu0 0
  %404 = vmatprep.subr.bf16.mxu0 0
  %405 = vmatpush1.bf16.msra.mxu0 0
  %406 = vmatprep.subr.bf16.mxu0 0
  %407 = vmatpush1.bf16.msra.mxu0 0
  %408 = vmatprep.subr.bf16.mxu0 0
  %409 = vmatpush1.bf16.msra.mxu0 0
  %410 = vmatprep.subr.bf16.mxu0 0
  %411 = vmatpush1.bf16.msra.mxu0 0
  %412 = vmatprep.subr.bf16.mxu0 0
  %413 = vmatpush1.bf16.msra.mxu0 0
  %414 = vmatprep.subr.bf16.mxu0 0
  %415 = vmatpush1.bf16.msra.mxu0 0
  %416 = vmatprep.subr.bf16.mxu0 0
  %417 = vmatpush1.bf16.msra.mxu0 0
  %418 = vmatprep.mubr.bf16.mxu0 0
  %419 = vmatmul.mubr.bf16.gmra.mrb[0].mxu0 %v381
  %v420 = vpop.f32.mrb[0].mxu0
  %v421 = vadd.f32 %v352, %v420
  %v422 = vpop.f32.mrb[0].mxu0
  %v423 = vpop.f32.mrb[0].mxu0
  %v424 = vadd.f32 %v357, %v423
  %v425 = vpop.f32.mrb[0].mxu0
  %426 = vmatprep.mubr.bf16.mxu0 0
  %427 = vmatmul.mubr.bf16.gmra.mrb[0].mxu0 %v384
  %v428 = vpop.f32.mrb[0].mxu0
  %v429 = vadd.f32 %v362, %v428
  %v430 = vpop.f32.mrb[0].mxu0
  %v431 = vpop.f32.mrb[0].mxu0
  %v432 = vadd.f32 %v367, %v431
  %v433 = vpop.f32.mrb[0].mxu0
  %434 = vdwg.mxu0
  %v435 = vmul.f32 %v421, 0.01
  %v436 = vmul.f32 %v424, 0.01
  %v437 = vmul.f32 %v429, 0.01
  %v438 = vmul.f32 %v432, 0.01
  %v439 = vmax.f32 %v421, %v435
  %v440 = vmax.f32 %v424, %v436
  %v441 = vmax.f32 %v429, %v437
  %v442 = vmax.f32 %v432, %v438
  %v443 = vpack.c.bf16 %v440, %v439
  %v444 = vpack.c.bf16 %v442, %v441
  %v445 = vld [vmem:[%s6] sm:$0xf]
  %v446 = vld [vmem:[%s6 + $0x4] sm:$0xf]
  %v447 = vld [vmem:[%s6 + $0x8] sm:$0xf]
  %v448 = vld [vmem:[%s6 + $0xc] sm:$0xf]
  %v449 = vld [vmem:[%s6 + $0x10] sm:$0xf]
  %v450 = vld [vmem:[%s6 + $0x14] sm:$0xf]
  %v451 = vld [vmem:[%s6 + $0x18] sm:$0xf]
  %v452 = vld [vmem:[%s6 + $0x1c] sm:$0xf]
  %v453 = vld [vmem:[%s7] sm:$0xff]
  %v454 = vld [vmem:[%s7 + $0x8] sm:$0xff]
  %v455 = vld [vmem:[%s7 + $0x10] sm:$0xff]
  %v456 = vld [vmem:[%s7 + $0x18] sm:$0xff]
  %v457 = vld [vmem:[%s7 + $0x20] sm:$0xff]
  %v458 = vld [vmem:[%s7 + $0x28] sm:$0xff]
  %v459 = vld [vmem:[%s7 + $0x30] sm:$0xff]
  %v460 = vld [vmem:[%s7 + $0x38] sm:$0xff]
  %462 = vset.pattern.permute.xlu0 0
  %463 = vperm.xlu0 %462, %v453
  %v464 = vpop.permute.xlu0 %463
  %467 = vset.pattern.permute.xlu0 0
  %468 = vperm.xlu0 %467, %v454
  %v469 = vpop.permute.xlu0 %468
  %472 = vset.pattern.permute.xlu0 0
  %473 = vperm.xlu0 %472, %v455
  %v474 = vpop.permute.xlu0 %473
  %477 = vset.pattern.permute.xlu0 0
  %478 = vperm.xlu0 %477, %v456
  %v479 = vpop.permute.xlu0 %478
  %482 = vset.pattern.permute.xlu0 0
  %483 = vperm.xlu0 %482, %v457
  %v484 = vpop.permute.xlu0 %483
  %487 = vset.pattern.permute.xlu0 0
  %488 = vperm.xlu0 %487, %v458
  %v489 = vpop.permute.xlu0 %488
  %492 = vset.pattern.permute.xlu0 0
  %493 = vperm.xlu0 %492, %v459
  %v494 = vpop.permute.xlu0 %493
  %497 = vset.pattern.permute.xlu0 0
  %498 = vperm.xlu0 %497, %v460
  %v499 = vpop.permute.xlu0 %498
  %v509 = vunpack.c.l.b16 %v445
  %v510 = vunpack.c.l.b16 %v446
  %v511 = vunpack.c.l.b16 %v447
  %v512 = vunpack.c.l.b16 %v448
  %v513 = vunpack.c.l.b16 %v449
  %v514 = vunpack.c.l.b16 %v450
  %v515 = vunpack.c.l.b16 %v451
  %v516 = vunpack.c.l.b16 %v452
  %v517 = vpack.c.b16 %v510, %v509
  %v518 = vpack.c.b16 %v512, %v511
  %v519 = vpack.c.b16 %v514, %v513
  %v520 = vpack.c.b16 %v516, %v515
  %v537 = vunpack.c.l.b16 %v87
  %v538 = vunpack.c.l.b16 %v88
  %v539 = vunpack.c.l.b16 %v89
  %v540 = vunpack.c.l.b16 %v90
  %v541 = vunpack.c.l.b16 %v91
  %v542 = vunpack.c.l.b16 %v92
  %v543 = vunpack.c.l.b16 %v93
  %v544 = vunpack.c.l.b16 %v94
  %v545 = vunpack.c.l.b16 %v95
  %v546 = vunpack.c.l.b16 %v96
  %v547 = vunpack.c.l.b16 %v97
  %v548 = vunpack.c.l.b16 %v98
  %v549 = vunpack.c.l.b16 %v99
  %v550 = vunpack.c.l.b16 %v100
  %v551 = vunpack.c.l.b16 %v101
  %v552 = vunpack.c.l.b16 %v102
  %v553 = vpack.c.b16 %v538, %v537
  %v554 = vpack.c.b16 %v540, %v539
  %v555 = vpack.c.b16 %v542, %v541
  %v556 = vpack.c.b16 %v544, %v543
  %v557 = vpack.c.b16 %v546, %v545
  %v558 = vpack.c.b16 %v548, %v547
  %v559 = vpack.c.b16 %v550, %v549
  %v560 = vpack.c.b16 %v552, %v551
  %v562 = vsel %vm219, %v517, 0
  %v565 = vsel %vm219, %v518, 0
  %v568 = vsel %vm219, %v519, 0
  %v571 = vsel %vm219, %v520, 0
  %v574 = vsel %vm219, %v553, 0
  %v577 = vsel %vm219, %v554, 0
  %v580 = vsel %vm219, %v555, 0
  %v583 = vsel %vm219, %v556, 0
  %v586 = vsel %vm219, %v557, 0
  %v589 = vsel %vm219, %v558, 0
  %v592 = vsel %vm219, %v559, 0
  %v595 = vsel %vm219, %v560, 0
  %597 = vmatprep.subr.bf16.mxu0 0
  %598 = vmatpush1.bf16.xpose.msra.mxu0 %v574
  %599 = vmatprep.subr.bf16.mxu0 0
  %600 = vmatpush1.bf16.xpose.msra.mxu0 %v577
  %601 = vmatprep.subr.bf16.mxu0 0
  %602 = vmatpush1.bf16.xpose.msra.mxu0 %v580
  %603 = vmatprep.subr.bf16.mxu0 0
  %604 = vmatpush1.bf16.xpose.msra.mxu0 %v583
  %605 = vmatprep.subr.bf16.mxu0 0
  %606 = vmatpush1.bf16.xpose.msra.mxu0 %v586
  %607 = vmatprep.subr.bf16.mxu0 0
  %608 = vmatpush1.bf16.xpose.msra.mxu0 %v589
  %609 = vmatprep.subr.bf16.mxu0 0
  %610 = vmatpush1.bf16.xpose.msra.mxu0 %v592
  %611 = vmatprep.subr.bf16.mxu0 0
  %612 = vmatpush1.bf16.xpose.msra.mxu0 %v595
  %613 = vmatprep.subr.bf16.mxu0 0
  %614 = vmatpush1.bf16.xpose.msra.mxu0 0
  %615 = vmatprep.subr.bf16.mxu0 0
  %616 = vmatpush1.bf16.xpose.msra.mxu0 0
  %617 = vmatprep.subr.bf16.mxu0 0
  %618 = vmatpush1.bf16.xpose.msra.mxu0 0
  %619 = vmatprep.subr.bf16.mxu0 0
  %620 = vmatpush1.bf16.xpose.msra.mxu0 0
  %621 = vmatprep.subr.bf16.mxu0 0
  %622 = vmatpush1.bf16.xpose.msra.mxu0 0
  %623 = vmatprep.subr.bf16.mxu0 0
  %624 = vmatpush1.bf16.xpose.msra.mxu0 0
  %625 = vmatprep.subr.bf16.mxu0 0
  %626 = vmatpush1.bf16.xpose.msra.mxu0 0
  %627 = vmatprep.subr.bf16.mxu0 0
  %628 = vmatpush1.bf16.xpose.msra.mxu0 0
  %629 = vmatprep.mubr.bf16.mxu0 0
  %630 = vmatmul.mubr.bf16.gmra.mrb[0].mxu0 %v562
  %v631 = vpop.f32.mrb[0].mxu0
  %v632 = vadd.f32 %v464, %v631
  %v633 = vpop.f32.mrb[0].mxu0
  %v634 = vpop.f32.mrb[0].mxu0
  %v635 = vadd.f32 %v469, %v634
  %v636 = vpop.f32.mrb[0].mxu0
  %637 = vmatprep.mubr.bf16.mxu0 0
  %638 = vmatmul.mubr.bf16.gmra.mrb[0].mxu0 %v565
  %v639 = vpop.f32.mrb[0].mxu0
  %v640 = vadd.f32 %v474, %v639
  %v641 = vpop.f32.mrb[0].mxu0
  %v642 = vpop.f32.mrb[0].mxu0
  %v643 = vadd.f32 %v479, %v642
  %v644 = vpop.f32.mrb[0].mxu0
  %645 = vmatprep.mubr.bf16.mxu0 0
  %646 = vmatmul.mubr.bf16.gmra.mrb[0].mxu0 %v568
  %v647 = vpop.f32.mrb[0].mxu0
  %v648 = vadd.f32 %v484, %v647
  %v649 = vpop.f32.mrb[0].mxu0
  %v650 = vpop.f32.mrb[0].mxu0
  %v651 = vadd.f32 %v489, %v650
  %v652 = vpop.f32.mrb[0].mxu0
  %653 = vmatprep.mubr.bf16.mxu0 0
  %654 = vmatmul.mubr.bf16.gmra.mrb[0].mxu0 %v571
  %v655 = vpop.f32.mrb[0].mxu0
  %v656 = vadd.f32 %v494, %v655
  %v657 = vpop.f32.mrb[0].mxu0
  %v658 = vpop.f32.mrb[0].mxu0
  %v659 = vadd.f32 %v499, %v658
  %v660 = vpop.f32.mrb[0].mxu0
  %661 = vdwg.mxu0
  %v662 = vmul.f32 %v632, 0.01
  %v663 = vmul.f32 %v635, 0.01
  %v664 = vmul.f32 %v640, 0.01
  %v665 = vmul.f32 %v643, 0.01
  %v666 = vmul.f32 %v648, 0.01
  %v667 = vmul.f32 %v651, 0.01
  %v668 = vmul.f32 %v656, 0.01
  %v669 = vmul.f32 %v659, 0.01
  %v670 = vmax.f32 %v632, %v662
  %v671 = vmax.f32 %v635, %v663
  %v672 = vmax.f32 %v640, %v664
  %v673 = vmax.f32 %v643, %v665
  %v674 = vmax.f32 %v648, %v666
  %v675 = vmax.f32 %v651, %v667
  %v676 = vmax.f32 %v656, %v668
  %v677 = vmax.f32 %v659, %v669
  %v678 = vpack.c.bf16 %v671, %v670
  %v679 = vpack.c.bf16 %v673, %v672
  %v680 = vpack.c.bf16 %v675, %v674
  %v681 = vpack.c.bf16 %v677, %v676
  %v682 = vld [vmem:[%s8] sm:$0xf]
  %v683 = vld [vmem:[%s8 + $0x4] sm:$0xf]
  %v684 = vld [vmem:[%s8 + $0x8] sm:$0xf]
  %v685 = vld [vmem:[%s8 + $0xc] sm:$0xf]
  %v686 = vld [vmem:[%s9] sm:$0xff]
  %v687 = vld [vmem:[%s9 + $0x8] sm:$0xff]
  %v688 = vld [vmem:[%s9 + $0x10] sm:$0xff]
  %v689 = vld [vmem:[%s9 + $0x18] sm:$0xff]
  %691 = vset.pattern.permute.xlu0 0
  %692 = vperm.xlu0 %691, %v686
  %v693 = vpop.permute.xlu0 %692
  %696 = vset.pattern.permute.xlu0 0
  %697 = vperm.xlu0 %696, %v687
  %v698 = vpop.permute.xlu0 %697
  %701 = vset.pattern.permute.xlu0 0
  %702 = vperm.xlu0 %701, %v688
  %v703 = vpop.permute.xlu0 %702
  %706 = vset.pattern.permute.xlu0 0
  %707 = vperm.xlu0 %706, %v689
  %v708 = vpop.permute.xlu0 %707
  %v714 = vunpack.c.l.b16 %v682
  %v715 = vunpack.c.l.b16 %v683
  %v716 = vunpack.c.l.b16 %v684
  %v717 = vunpack.c.l.b16 %v685
  %v718 = vpack.c.b16 %v715, %v714
  %v719 = vpack.c.b16 %v717, %v716
  %v721 = vsel %vm379, %v718, 0
  %v724 = vsel %vm379, %v719, 0
  %726 = vmatprep.subr.bf16.mxu0 0
  %727 = vmatpush1.bf16.msra.mxu0 %v678
  %728 = vmatprep.subr.bf16.mxu0 0
  %729 = vmatpush1.bf16.msra.mxu0 %v679
  %730 = vmatprep.subr.bf16.mxu0 0
  %731 = vmatpush1.bf16.msra.mxu0 %v680
  %732 = vmatprep.subr.bf16.mxu0 0
  %733 = vmatpush1.bf16.msra.mxu0 %v681
  %734 = vmatprep.subr.bf16.mxu0 0
  %735 = vmatpush1.bf16.msra.mxu0 0
  %736 = vmatprep.subr.bf16.mxu0 0
  %737 = vmatpush1.bf16.msra.mxu0 0
  %738 = vmatprep.subr.bf16.mxu0 0
  %739 = vmatpush1.bf16.msra.mxu0 0
  %740 = vmatprep.subr.bf16.mxu0 0
  %741 = vmatpush1.bf16.msra.mxu0 0
  %742 = vmatprep.subr.bf16.mxu0 0
  %743 = vmatpush1.bf16.msra.mxu0 0
  %744 = vmatprep.subr.bf16.mxu0 0
  %745 = vmatpush1.bf16.msra.mxu0 0
  %746 = vmatprep.subr.bf16.mxu0 0
  %747 = vmatpush1.bf16.msra.mxu0 0
  %748 = vmatprep.subr.bf16.mxu0 0
  %749 = vmatpush1.bf16.msra.mxu0 0
  %750 = vmatprep.subr.bf16.mxu0 0
  %751 = vmatpush1.bf16.msra.mxu0 0
  %752 = vmatprep.subr.bf16.mxu0 0
  %753 = vmatpush1.bf16.msra.mxu0 0
  %754 = vmatprep.subr.bf16.mxu0 0
  %755 = vmatpush1.bf16.msra.mxu0 0
  %756 = vmatprep.subr.bf16.mxu0 0
  %757 = vmatpush1.bf16.msra.mxu0 0
  %758 = vmatprep.mubr.bf16.mxu0 0
  %759 = vmatmul.mubr.bf16.gmra.mrb[0].mxu0 %v721
  %v760 = vpop.f32.mrb[0].mxu0
  %v761 = vadd.f32 %v693, %v760
  %v762 = vpop.f32.mrb[0].mxu0
  %v763 = vpop.f32.mrb[0].mxu0
  %v764 = vadd.f32 %v698, %v763
  %v765 = vpop.f32.mrb[0].mxu0
  %766 = vmatprep.mubr.bf16.mxu0 0
  %767 = vmatmul.mubr.bf16.gmra.mrb[0].mxu0 %v724
  %v768 = vpop.f32.mrb[0].mxu0
  %v769 = vadd.f32 %v703, %v768
  %v770 = vpop.f32.mrb[0].mxu0
  %v771 = vpop.f32.mrb[0].mxu0
  %v772 = vadd.f32 %v708, %v771
  %v773 = vpop.f32.mrb[0].mxu0
  %774 = vdwg.mxu0
  %v775 = vmul.f32 %v761, 0.01
  %v776 = vmul.f32 %v764, 0.01
  %v777 = vmul.f32 %v769, 0.01
  %v778 = vmul.f32 %v772, 0.01
  %v779 = vmax.f32 %v761, %v775
  %v780 = vmax.f32 %v764, %v776
  %v781 = vmax.f32 %v769, %v777
  %v782 = vmax.f32 %v772, %v778
  %v783 = vpack.c.bf16 %v780, %v779
  %v784 = vpack.c.bf16 %v782, %v781
  %v785 = vld [vmem:[%s10] sm:$0xf]
  %v786 = vld [vmem:[%s10 + $0x4] sm:$0xf]
  %v787 = vld [vmem:[%s10 + $0x8] sm:$0xf]
  %v788 = vld [vmem:[%s10 + $0xc] sm:$0xf]
  %v789 = vld [vmem:[%s10 + $0x10] sm:$0xf]
  %v790 = vld [vmem:[%s10 + $0x14] sm:$0xf]
  %v791 = vld [vmem:[%s10 + $0x18] sm:$0xf]
  %v792 = vld [vmem:[%s10 + $0x1c] sm:$0xf]
  %v793 = vld [vmem:[%s11] sm:$0xf]
  %v794 = vld [vmem:[%s11 + $0x4] sm:$0xf]
  %v795 = vld [vmem:[%s11 + $0x8] sm:$0xf]
  %v796 = vld [vmem:[%s11 + $0xc] sm:$0xf]
  %v797 = vld [vmem:[%s11 + $0x10] sm:$0xf]
  %v798 = vld [vmem:[%s11 + $0x14] sm:$0xf]
  %v799 = vld [vmem:[%s11 + $0x18] sm:$0xf]
  %v800 = vld [vmem:[%s11 + $0x1c] sm:$0xf]
  %v809 = vunpack.c.l.b16 %v793
  %v810 = vunpack.c.l.b16 %v794
  %v811 = vunpack.c.l.b16 %v795
  %v812 = vunpack.c.l.b16 %v796
  %v813 = vunpack.c.l.b16 %v797
  %v814 = vunpack.c.l.b16 %v798
  %v815 = vunpack.c.l.b16 %v799
  %v816 = vunpack.c.l.b16 %v800
  %v817 = vpack.c.b16 %v810, %v809
  %v818 = vpack.c.b16 %v812, %v811
  %v819 = vpack.c.b16 %v814, %v813
  %v820 = vpack.c.b16 %v816, %v815
  %v822 = vsel %vm219, %v817, 0
  %v825 = vsel %vm219, %v818, 0
  %v828 = vsel %vm219, %v819, 0
  %v831 = vsel %vm219, %v820, 0
  %833 = vmatprep.subr.bf16.mxu0 0
  %834 = vmatpush1.bf16.msra.mxu0 %v783
  %835 = vmatprep.subr.bf16.mxu0 0
  %836 = vmatpush1.bf16.msra.mxu0 %v784
  %837 = vmatprep.subr.bf16.mxu0 0
  %838 = vmatpush1.bf16.msra.mxu0 0
  %839 = vmatprep.subr.bf16.mxu0 0
  %840 = vmatpush1.bf16.msra.mxu0 0
  %841 = vmatprep.subr.bf16.mxu0 0
  %842 = vmatpush1.bf16.msra.mxu0 0
  %843 = vmatprep.subr.bf16.mxu0 0
  %844 = vmatpush1.bf16.msra.mxu0 0
  %845 = vmatprep.subr.bf16.mxu0 0
  %846 = vmatpush1.bf16.msra.mxu0 0
  %847 = vmatprep.subr.bf16.mxu0 0
  %848 = vmatpush1.bf16.msra.mxu0 0
  %849 = vmatprep.subr.bf16.mxu0 0
  %850 = vmatpush1.bf16.msra.mxu0 0
  %851 = vmatprep.subr.bf16.mxu0 0
  %852 = vmatpush1.bf16.msra.mxu0 0
  %853 = vmatprep.subr.bf16.mxu0 0
  %854 = vmatpush1.bf16.msra.mxu0 0
  %855 = vmatprep.subr.bf16.mxu0 0
  %856 = vmatpush1.bf16.msra.mxu0 0
  %857 = vmatprep.subr.bf16.mxu0 0
  %858 = vmatpush1.bf16.msra.mxu0 0
  %859 = vmatprep.subr.bf16.mxu0 0
  %860 = vmatpush1.bf16.msra.mxu0 0
  %861 = vmatprep.subr.bf16.mxu0 0
  %862 = vmatpush1.bf16.msra.mxu0 0
  %863 = vmatprep.subr.bf16.mxu0 0
  %864 = vmatpush1.bf16.msra.mxu0 0
  %865 = vmatprep.mubr.bf16.mxu0 0
  %866 = vmatmul.mubr.bf16.gmra.mrb[0].mxu0 %v822
  %v867 = vpop.f32.mrb[0].mxu0
  %v868 = vadd.f32 0.0, %v867
  %v869 = vpop.f32.mrb[0].mxu0
  %v870 = vpop.f32.mrb[0].mxu0
  %v871 = vadd.f32 0.0, %v870
  %v872 = vpop.f32.mrb[0].mxu0
  %873 = vmatprep.mubr.bf16.mxu0 0
  %874 = vmatmul.mubr.bf16.gmra.mrb[0].mxu0 %v825
  %v875 = vpop.f32.mrb[0].mxu0
  %v876 = vadd.f32 0.0, %v875
  %v877 = vpop.f32.mrb[0].mxu0
  %v878 = vpop.f32.mrb[0].mxu0
  %v879 = vadd.f32 0.0, %v878
  %v880 = vpop.f32.mrb[0].mxu0
  %881 = vmatprep.mubr.bf16.mxu0 0
  %882 = vmatmul.mubr.bf16.gmra.mrb[0].mxu0 %v828
  %v883 = vpop.f32.mrb[0].mxu0
  %v884 = vadd.f32 0.0, %v883
  %v885 = vpop.f32.mrb[0].mxu0
  %v886 = vpop.f32.mrb[0].mxu0
  %v887 = vadd.f32 0.0, %v886
  %v888 = vpop.f32.mrb[0].mxu0
  %889 = vmatprep.mubr.bf16.mxu0 0
  %890 = vmatmul.mubr.bf16.gmra.mrb[0].mxu0 %v831
  %v891 = vpop.f32.mrb[0].mxu0
  %v892 = vadd.f32 0.0, %v891
  %v893 = vpop.f32.mrb[0].mxu0
  %v894 = vpop.f32.mrb[0].mxu0
  %v895 = vadd.f32 0.0, %v894
  %v896 = vpop.f32.mrb[0].mxu0
  %897 = vdwg.mxu0
  %v906 = vunpack.c.l.b16 %v785
  %v907 = vunpack.c.l.b16 %v786
  %v908 = vunpack.c.l.b16 %v787
  %v909 = vunpack.c.l.b16 %v788
  %v910 = vunpack.c.l.b16 %v789
  %v911 = vunpack.c.l.b16 %v790
  %v912 = vunpack.c.l.b16 %v791
  %v913 = vunpack.c.l.b16 %v792
  %v914 = vpack.c.b16 %v907, %v906
  %v915 = vpack.c.b16 %v909, %v908
  %v916 = vpack.c.b16 %v911, %v910
  %v917 = vpack.c.b16 %v913, %v912
  %v919 = vsel %vm219, %v914, 0
  %v922 = vsel %vm219, %v915, 0
  %v925 = vsel %vm219, %v916, 0
  %v928 = vsel %vm219, %v917, 0
  %930 = vmatprep.subr.bf16.mxu0 0
  %931 = vmatpush1.bf16.msra.mxu0 %v443
  %932 = vmatprep.subr.bf16.mxu0 0
  %933 = vmatpush1.bf16.msra.mxu0 %v444
  %934 = vmatprep.subr.bf16.mxu0 0
  %935 = vmatpush1.bf16.msra.mxu0 0
  %936 = vmatprep.subr.bf16.mxu0 0
  %937 = vmatpush1.bf16.msra.mxu0 0
  %938 = vmatprep.subr.bf16.mxu0 0
  %939 = vmatpush1.bf16.msra.mxu0 0
  %940 = vmatprep.subr.bf16.mxu0 0
  %941 = vmatpush1.bf16.msra.mxu0 0
  %942 = vmatprep.subr.bf16.mxu0 0
  %943 = vmatpush1.bf16.msra.mxu0 0
  %944 = vmatprep.subr.bf16.mxu0 0
  %945 = vmatpush1.bf16.msra.mxu0 0
  %946 = vmatprep.subr.bf16.mxu0 0
  %947 = vmatpush1.bf16.msra.mxu0 0
  %948 = vmatprep.subr.bf16.mxu0 0
  %949 = vmatpush1.bf16.msra.mxu0 0
  %950 = vmatprep.subr.bf16.mxu0 0
  %951 = vmatpush1.bf16.msra.mxu0 0
  %952 = vmatprep.subr.bf16.mxu0 0
  %953 = vmatpush1.bf16.msra.mxu0 0
  %954 = vmatprep.subr.bf16.mxu0 0
  %955 = vmatpush1.bf16.msra.mxu0 0
  %956 = vmatprep.subr.bf16.mxu0 0
  %957 = vmatpush1.bf16.msra.mxu0 0
  %958 = vmatprep.subr.bf16.mxu0 0
  %959 = vmatpush1.bf16.msra.mxu0 0
  %960 = vmatprep.subr.bf16.mxu0 0
  %961 = vmatpush1.bf16.msra.mxu0 0
  %962 = vmatprep.mubr.bf16.mxu0 0
  %963 = vmatmul.mubr.bf16.gmra.mrb[0].mxu0 %v919
  %v964 = vpop.f32.mrb[0].mxu0
  %v965 = vadd.f32 %v868, %v964
  %v966 = vpop.f32.mrb[0].mxu0
  %v967 = vpop.f32.mrb[0].mxu0
  %v968 = vadd.f32 %v871, %v967
  %v969 = vpop.f32.mrb[0].mxu0
  %970 = vmatprep.mubr.bf16.mxu0 0
  %971 = vmatmul.mubr.bf16.gmra.mrb[0].mxu0 %v922
  %v972 = vpop.f32.mrb[0].mxu0
  %v973 = vadd.f32 %v876, %v972
  %v974 = vpop.f32.mrb[0].mxu0
  %v975 = vpop.f32.mrb[0].mxu0
  %v976 = vadd.f32 %v879, %v975
  %v977 = vpop.f32.mrb[0].mxu0
  %978 = vmatprep.mubr.bf16.mxu0 0
  %979 = vmatmul.mubr.bf16.gmra.mrb[0].mxu0 %v925
  %v980 = vpop.f32.mrb[0].mxu0
  %v981 = vadd.f32 %v884, %v980
  %v982 = vpop.f32.mrb[0].mxu0
  %v983 = vpop.f32.mrb[0].mxu0
  %v984 = vadd.f32 %v887, %v983
  %v985 = vpop.f32.mrb[0].mxu0
  %986 = vmatprep.mubr.bf16.mxu0 0
  %987 = vmatmul.mubr.bf16.gmra.mrb[0].mxu0 %v928
  %v988 = vpop.f32.mrb[0].mxu0
  %v989 = vadd.f32 %v892, %v988
  %v990 = vpop.f32.mrb[0].mxu0
  %v991 = vpop.f32.mrb[0].mxu0
  %v992 = vadd.f32 %v895, %v991
  %v993 = vpop.f32.mrb[0].mxu0
  %994 = vdwg.mxu0
  %v995 = vld [vmem:[%s12] sm:$0xff]
  %v996 = vld [vmem:[%s12 + $0x8] sm:$0xff]
  %v997 = vld [vmem:[%s12 + $0x10] sm:$0xff]
  %v998 = vld [vmem:[%s12 + $0x18] sm:$0xff]
  %v999 = vld [vmem:[%s12 + $0x20] sm:$0xff]
  %v1000 = vld [vmem:[%s12 + $0x28] sm:$0xff]
  %v1001 = vld [vmem:[%s12 + $0x30] sm:$0xff]
  %v1002 = vld [vmem:[%s12 + $0x38] sm:$0xff]
  %1004 = vset.pattern.permute.xlu0 0
  %1005 = vperm.xlu0 %1004, %v995
  %v1006 = vpop.permute.xlu0 %1005
  %1009 = vset.pattern.permute.xlu0 0
  %1010 = vperm.xlu0 %1009, %v996
  %v1011 = vpop.permute.xlu0 %1010
  %1014 = vset.pattern.permute.xlu0 0
  %1015 = vperm.xlu0 %1014, %v997
  %v1016 = vpop.permute.xlu0 %1015
  %1019 = vset.pattern.permute.xlu0 0
  %1020 = vperm.xlu0 %1019, %v998
  %v1021 = vpop.permute.xlu0 %1020
  %1024 = vset.pattern.permute.xlu0 0
  %1025 = vperm.xlu0 %1024, %v999
  %v1026 = vpop.permute.xlu0 %1025
  %1029 = vset.pattern.permute.xlu0 0
  %1030 = vperm.xlu0 %1029, %v1000
  %v1031 = vpop.permute.xlu0 %1030
  %1034 = vset.pattern.permute.xlu0 0
  %1035 = vperm.xlu0 %1034, %v1001
  %v1036 = vpop.permute.xlu0 %1035
  %1039 = vset.pattern.permute.xlu0 0
  %1040 = vperm.xlu0 %1039, %v1002
  %v1041 = vpop.permute.xlu0 %1040
  %v1043 = vadd.f32 %v965, %v1006
  %v1044 = vadd.f32 %v968, %v1011
  %v1045 = vadd.f32 %v973, %v1016
  %v1046 = vadd.f32 %v976, %v1021
  %v1047 = vadd.f32 %v981, %v1026
  %v1048 = vadd.f32 %v984, %v1031
  %v1049 = vadd.f32 %v989, %v1036
  %v1050 = vadd.f32 %v992, %v1041
  %v1051 = vmul.f32 %v1043, 0.01
  %v1052 = vmul.f32 %v1044, 0.01
  %v1053 = vmul.f32 %v1045, 0.01
  %v1054 = vmul.f32 %v1046, 0.01
  %v1055 = vmul.f32 %v1047, 0.01
  %v1056 = vmul.f32 %v1048, 0.01
  %v1057 = vmul.f32 %v1049, 0.01
  %v1058 = vmul.f32 %v1050, 0.01
  %v1059 = vmax.f32 %v1043, %v1051
  %v1060 = vmax.f32 %v1044, %v1052
  %v1061 = vmax.f32 %v1045, %v1053
  %v1062 = vmax.f32 %v1046, %v1054
  %v1063 = vmax.f32 %v1047, %v1055
  %v1064 = vmax.f32 %v1048, %v1056
  %v1065 = vmax.f32 %v1049, %v1057
  %v1066 = vmax.f32 %v1050, %v1058
  %v1067 = vpack.c.bf16 %v1060, %v1059
  %v1068 = vpack.c.bf16 %v1062, %v1061
  %v1069 = vpack.c.bf16 %v1064, %v1063
  %v1070 = vpack.c.bf16 %v1066, %v1065
  %v1071 = vld [vmem:[%s13] sm:$0xf]
  %v1072 = vld [vmem:[%s13 + $0x4] sm:$0xf]
  %v1073 = vld [vmem:[%s13 + $0x8] sm:$0xf]
  %v1074 = vld [vmem:[%s13 + $0xc] sm:$0xf]
  %v1075 = vld [vmem:[%s13 + $0x10] sm:$0xf]
  %v1076 = vld [vmem:[%s13 + $0x14] sm:$0xf]
  %v1077 = vld [vmem:[%s13 + $0x18] sm:$0xf]
  %v1078 = vld [vmem:[%s13 + $0x1c] sm:$0xf]
  %v1079 = vld [vmem:[%s14] sm:$0xff]
  %v1080 = vld [vmem:[%s14 + $0x8] sm:$0xff]
  %v1081 = vld [vmem:[%s14 + $0x10] sm:$0xff]
  %v1082 = vld [vmem:[%s14 + $0x18] sm:$0xff]
  %v1083 = vld [vmem:[%s14 + $0x20] sm:$0xff]
  %v1084 = vld [vmem:[%s14 + $0x28] sm:$0xff]
  %v1085 = vld [vmem:[%s14 + $0x30] sm:$0xff]
  %v1086 = vld [vmem:[%s14 + $0x38] sm:$0xff]
  %1088 = vset.pattern.permute.xlu0 0
  %1089 = vperm.xlu0 %1088, %v1079
  %v1090 = vpop.permute.xlu0 %1089
  %1093 = vset.pattern.permute.xlu0 0
  %1094 = vperm.xlu0 %1093, %v1080
  %v1095 = vpop.permute.xlu0 %1094
  %1098 = vset.pattern.permute.xlu0 0
  %1099 = vperm.xlu0 %1098, %v1081
  %v1100 = vpop.permute.xlu0 %1099
  %1103 = vset.pattern.permute.xlu0 0
  %1104 = vperm.xlu0 %1103, %v1082
  %v1105 = vpop.permute.xlu0 %1104
  %1108 = vset.pattern.permute.xlu0 0
  %1109 = vperm.xlu0 %1108, %v1083
  %v1110 = vpop.permute.xlu0 %1109
  %1113 = vset.pattern.permute.xlu0 0
  %1114 = vperm.xlu0 %1113, %v1084
  %v1115 = vpop.permute.xlu0 %1114
  %1118 = vset.pattern.permute.xlu0 0
  %1119 = vperm.xlu0 %1118, %v1085
  %v1120 = vpop.permute.xlu0 %1119
  %1123 = vset.pattern.permute.xlu0 0
  %1124 = vperm.xlu0 %1123, %v1086
  %v1125 = vpop.permute.xlu0 %1124
  %v1135 = vunpack.c.l.b16 %v1071
  %v1136 = vunpack.c.l.b16 %v1072
  %v1137 = vunpack.c.l.b16 %v1073
  %v1138 = vunpack.c.l.b16 %v1074
  %v1139 = vunpack.c.l.b16 %v1075
  %v1140 = vunpack.c.l.b16 %v1076
  %v1141 = vunpack.c.l.b16 %v1077
  %v1142 = vunpack.c.l.b16 %v1078
  %v1143 = vpack.c.b16 %v1136, %v1135
  %v1144 = vpack.c.b16 %v1138, %v1137
  %v1145 = vpack.c.b16 %v1140, %v1139
  %v1146 = vpack.c.b16 %v1142, %v1141
  %v1148 = vsel %vm379, %v1143, 0
  %v1151 = vsel %vm379, %v1144, 0
  %v1154 = vsel %vm379, %v1145, 0
  %v1157 = vsel %vm379, %v1146, 0
  %1159 = vmatprep.subr.bf16.mxu0 0
  %1160 = vmatpush1.bf16.msra.mxu0 %v1067
  %1161 = vmatprep.subr.bf16.mxu0 0
  %1162 = vmatpush1.bf16.msra.mxu0 %v1068
  %1163 = vmatprep.subr.bf16.mxu0 0
  %1164 = vmatpush1.bf16.msra.mxu0 %v1069
  %1165 = vmatprep.subr.bf16.mxu0 0
  %1166 = vmatpush1.bf16.msra.mxu0 %v1070
  %1167 = vmatprep.subr.bf16.mxu0 0
  %1168 = vmatpush1.bf16.msra.mxu0 0
  %1169 = vmatprep.subr.bf16.mxu0 0
  %1170 = vmatpush1.bf16.msra.mxu0 0
  %1171 = vmatprep.subr.bf16.mxu0 0
  %1172 = vmatpush1.bf16.msra.mxu0 0
  %1173 = vmatprep.subr.bf16.mxu0 0
  %1174 = vmatpush1.bf16.msra.mxu0 0
  %1175 = vmatprep.subr.bf16.mxu0 0
  %1176 = vmatpush1.bf16.msra.mxu0 0
  %1177 = vmatprep.subr.bf16.mxu0 0
  %1178 = vmatpush1.bf16.msra.mxu0 0
  %1179 = vmatprep.subr.bf16.mxu0 0
  %1180 = vmatpush1.bf16.msra.mxu0 0
  %1181 = vmatprep.subr.bf16.mxu0 0
  %1182 = vmatpush1.bf16.msra.mxu0 0
  %1183 = vmatprep.subr.bf16.mxu0 0
  %1184 = vmatpush1.bf16.msra.mxu0 0
  %1185 = vmatprep.subr.bf16.mxu0 0
  %1186 = vmatpush1.bf16.msra.mxu0 0
  %1187 = vmatprep.subr.bf16.mxu0 0
  %1188 = vmatpush1.bf16.msra.mxu0 0
  %1189 = vmatprep.subr.bf16.mxu0 0
  %1190 = vmatpush1.bf16.msra.mxu0 0
  %1191 = vmatprep.mubr.bf16.mxu0 0
  %1192 = vmatmul.mubr.bf16.gmra.mrb[0].mxu0 %v1148
  %v1193 = vpop.f32.mrb[0].mxu0
  %v1194 = vadd.f32 %v1090, %v1193
  %v1195 = vpop.f32.mrb[0].mxu0
  %v1196 = vpop.f32.mrb[0].mxu0
  %v1197 = vadd.f32 %v1095, %v1196
  %v1198 = vpop.f32.mrb[0].mxu0
  %1199 = vmatprep.mubr.bf16.mxu0 0
  %1200 = vmatmul.mubr.bf16.gmra.mrb[0].mxu0 %v1151
  %v1201 = vpop.f32.mrb[0].mxu0
  %v1202 = vadd.f32 %v1100, %v1201
  %v1203 = vpop.f32.mrb[0].mxu0
  %v1204 = vpop.f32.mrb[0].mxu0
  %v1205 = vadd.f32 %v1105, %v1204
  %v1206 = vpop.f32.mrb[0].mxu0
  %1207 = vmatprep.mubr.bf16.mxu0 0
  %1208 = vmatmul.mubr.bf16.gmra.mrb[0].mxu0 %v1154
  %v1209 = vpop.f32.mrb[0].mxu0
  %v1210 = vadd.f32 %v1110, %v1209
  %v1211 = vpop.f32.mrb[0].mxu0
  %v1212 = vpop.f32.mrb[0].mxu0
  %v1213 = vadd.f32 %v1115, %v1212
  %v1214 = vpop.f32.mrb[0].mxu0
  %1215 = vmatprep.mubr.bf16.mxu0 0
  %1216 = vmatmul.mubr.bf16.gmra.mrb[0].mxu0 %v1157
  %v1217 = vpop.f32.mrb[0].mxu0
  %v1218 = vadd.f32 %v1120, %v1217
  %v1219 = vpop.f32.mrb[0].mxu0
  %v1220 = vpop.f32.mrb[0].mxu0
  %v1221 = vadd.f32 %v1125, %v1220
  %v1222 = vpop.f32.mrb[0].mxu0
  %1223 = vdwg.mxu0
  %v1224 = vmul.f32 %v1194, 0.01
  %v1225 = vmul.f32 %v1197, 0.01
  %v1226 = vmul.f32 %v1202, 0.01
  %v1227 = vmul.f32 %v1205, 0.01
  %v1228 = vmul.f32 %v1210, 0.01
  %v1229 = vmul.f32 %v1213, 0.01
  %v1230 = vmul.f32 %v1218, 0.01
  %v1231 = vmul.f32 %v1221, 0.01
  %v1232 = vmax.f32 %v1194, %v1224
  %v1233 = vmax.f32 %v1197, %v1225
  %v1234 = vmax.f32 %v1202, %v1226
  %v1235 = vmax.f32 %v1205, %v1227
  %v1236 = vmax.f32 %v1210, %v1228
  %v1237 = vmax.f32 %v1213, %v1229
  %v1238 = vmax.f32 %v1218, %v1230
  %v1239 = vmax.f32 %v1221, %v1231
  %v1240 = vpack.c.bf16 %v1233, %v1232
  %v1241 = vpack.c.bf16 %v1235, %v1234
  %v1242 = vpack.c.bf16 %v1237, %v1236
  %v1243 = vpack.c.bf16 %v1239, %v1238
  %v1244 = vld [vmem:[%s15] sm:$0xf]
  %v1245 = vld [vmem:[%s15 + $0x4] sm:$0xf]
  %v1246 = vld [vmem:[%s15 + $0x8] sm:$0xf]
  %v1247 = vld [vmem:[%s15 + $0xc] sm:$0xf]
  %v1248 = vld [vmem:[%s16] sm:$0xff]
  %v1249 = vld [vmem:[%s16 + $0x8] sm:$0xff]
  %v1250 = vld [vmem:[%s16 + $0x10] sm:$0xff]
  %v1251 = vld [vmem:[%s16 + $0x18] sm:$0xff]
  %1253 = vset.pattern.permute.xlu0 0
  %1254 = vperm.xlu0 %1253, %v1248
  %v1255 = vpop.permute.xlu0 %1254
  %1258 = vset.pattern.permute.xlu0 0
  %1259 = vperm.xlu0 %1258, %v1249
  %v1260 = vpop.permute.xlu0 %1259
  %1263 = vset.pattern.permute.xlu0 0
  %1264 = vperm.xlu0 %1263, %v1250
  %v1265 = vpop.permute.xlu0 %1264
  %1268 = vset.pattern.permute.xlu0 0
  %1269 = vperm.xlu0 %1268, %v1251
  %v1270 = vpop.permute.xlu0 %1269
  %v1276 = vunpack.c.l.b16 %v1244
  %v1277 = vunpack.c.l.b16 %v1245
  %v1278 = vunpack.c.l.b16 %v1246
  %v1279 = vunpack.c.l.b16 %v1247
  %v1280 = vpack.c.b16 %v1277, %v1276
  %v1281 = vpack.c.b16 %v1279, %v1278
  %v1283 = vsel %vm379, %v1280, 0
  %v1286 = vsel %vm379, %v1281, 0
  %1288 = vmatprep.subr.bf16.mxu0 0
  %1289 = vmatpush1.bf16.msra.mxu0 %v1240
  %1290 = vmatprep.subr.bf16.mxu0 0
  %1291 = vmatpush1.bf16.msra.mxu0 %v1241
  %1292 = vmatprep.subr.bf16.mxu0 0
  %1293 = vmatpush1.bf16.msra.mxu0 %v1242
  %1294 = vmatprep.subr.bf16.mxu0 0
  %1295 = vmatpush1.bf16.msra.mxu0 %v1243
  %1296 = vmatprep.subr.bf16.mxu0 0
  %1297 = vmatpush1.bf16.msra.mxu0 0
  %1298 = vmatprep.subr.bf16.mxu0 0
  %1299 = vmatpush1.bf16.msra.mxu0 0
  %1300 = vmatprep.subr.bf16.mxu0 0
  %1301 = vmatpush1.bf16.msra.mxu0 0
  %1302 = vmatprep.subr.bf16.mxu0 0
  %1303 = vmatpush1.bf16.msra.mxu0 0
  %1304 = vmatprep.subr.bf16.mxu0 0
  %1305 = vmatpush1.bf16.msra.mxu0 0
  %1306 = vmatprep.subr.bf16.mxu0 0
  %1307 = vmatpush1.bf16.msra.mxu0 0
  %1308 = vmatprep.subr.bf16.mxu0 0
  %1309 = vmatpush1.bf16.msra.mxu0 0
  %1310 = vmatprep.subr.bf16.mxu0 0
  %1311 = vmatpush1.bf16.msra.mxu0 0
  %1312 = vmatprep.subr.bf16.mxu0 0
  %1313 = vmatpush1.bf16.msra.mxu0 0
  %1314 = vmatprep.subr.bf16.mxu0 0
  %1315 = vmatpush1.bf16.msra.mxu0 0
  %1316 = vmatprep.subr.bf16.mxu0 0
  %1317 = vmatpush1.bf16.msra.mxu0 0
  %1318 = vmatprep.subr.bf16.mxu0 0
  %1319 = vmatpush1.bf16.msra.mxu0 0
  %1320 = vmatprep.mubr.bf16.mxu0 0
  %1321 = vmatmul.mubr.bf16.gmra.mrb[0].mxu0 %v1283
  %v1322 = vpop.f32.mrb[0].mxu0
  %v1323 = vadd.f32 %v1255, %v1322
  %v1324 = vpop.f32.mrb[0].mxu0
  %v1325 = vpop.f32.mrb[0].mxu0
  %v1326 = vadd.f32 %v1260, %v1325
  %v1327 = vpop.f32.mrb[0].mxu0
  %1328 = vmatprep.mubr.bf16.mxu0 0
  %1329 = vmatmul.mubr.bf16.gmra.mrb[0].mxu0 %v1286
  %v1330 = vpop.f32.mrb[0].mxu0
  %v1331 = vadd.f32 %v1265, %v1330
  %v1332 = vpop.f32.mrb[0].mxu0
  %v1333 = vpop.f32.mrb[0].mxu0
  %v1334 = vadd.f32 %v1270, %v1333
  %v1335 = vpop.f32.mrb[0].mxu0
  %1336 = vdwg.mxu0
  %v1337 = vmul.f32 %v1323, 0.01
  %v1338 = vmul.f32 %v1326, 0.01
  %v1339 = vmul.f32 %v1331, 0.01
  %v1340 = vmul.f32 %v1334, 0.01
  %v1341 = vmax.f32 %v1323, %v1337
  %v1342 = vmax.f32 %v1326, %v1338
  %v1343 = vmax.f32 %v1331, %v1339
  %v1344 = vmax.f32 %v1334, %v1340
  %v1345 = vpack.c.bf16 %v1342, %v1341
  %v1346 = vpack.c.bf16 %v1344, %v1343
  %v1347 = vld [vmem:[%s17] sm:$0xf]
  %v1348 = vld [vmem:[%s17 + $0x4] sm:$0xf]
  %v1349 = vld [vmem:[%s18] sm:$0xff]
  %v1350 = vld [vmem:[%s18 + $0x8] sm:$0xff]
  %1352 = vset.pattern.permute.xlu0 0
  %1353 = vperm.xlu0 %1352, %v1349
  %v1354 = vpop.permute.xlu0 %1353
  %1357 = vset.pattern.permute.xlu0 0
  %1358 = vperm.xlu0 %1357, %v1350
  %v1359 = vpop.permute.xlu0 %1358
  %v1363 = vunpack.c.l.b16 %v1347
  %v1364 = vunpack.c.l.b16 %v1348
  %v1365 = vpack.c.b16 %v1364, %v1363
  %v1367 = vsel %vm219, %v1365, 0
  %1369 = vmatprep.subr.bf16.mxu0 0
  %1370 = vmatpush1.bf16.msra.mxu0 %v1345
  %1371 = vmatprep.subr.bf16.mxu0 0
  %1372 = vmatpush1.bf16.msra.mxu0 %v1346
  %1373 = vmatprep.subr.bf16.mxu0 0
  %1374 = vmatpush1.bf16.msra.mxu0 0
  %1375 = vmatprep.subr.bf16.mxu0 0
  %1376 = vmatpush1.bf16.msra.mxu0 0
  %1377 = vmatprep.subr.bf16.mxu0 0
  %1378 = vmatpush1.bf16.msra.mxu0 0
  %1379 = vmatprep.subr.bf16.mxu0 0
  %1380 = vmatpush1.bf16.msra.mxu0 0
  %1381 = vmatprep.subr.bf16.mxu0 0
  %1382 = vmatpush1.bf16.msra.mxu0 0
  %1383 = vmatprep.subr.bf16.mxu0 0
  %1384 = vmatpush1.bf16.msra.mxu0 0
  %1385 = vmatprep.subr.bf16.mxu0 0
  %1386 = vmatpush1.bf16.msra.mxu0 0
  %1387 = vmatprep.subr.bf16.mxu0 0
  %1388 = vmatpush1.bf16.msra.mxu0 0
  %1389 = vmatprep.subr.bf16.mxu0 0
  %1390 = vmatpush1.bf16.msra.mxu0 0
  %1391 = vmatprep.subr.bf16.mxu0 0
  %1392 = vmatpush1.bf16.msra.mxu0 0
  %1393 = vmatprep.subr.bf16.mxu0 0
  %1394 = vmatpush1.bf16.msra.mxu0 0
  %1395 = vmatprep.subr.bf16.mxu0 0
  %1396 = vmatpush1.bf16.msra.mxu0 0
  %1397 = vmatprep.subr.bf16.mxu0 0
  %1398 = vmatpush1.bf16.msra.mxu0 0
  %1399 = vmatprep.subr.bf16.mxu0 0
  %1400 = vmatpush1.bf16.msra.mxu0 0
  %1401 = vmatprep.mubr.bf16.mxu0 0
  %1402 = vmatmul.mubr.bf16.gmra.mrb[0].mxu0 %v1367
  %v1403 = vpop.f32.mrb[0].mxu0
  %v1404 = vadd.f32 %v1354, %v1403
  %v1405 = vpop.f32.mrb[0].mxu0
  %v1406 = vpop.f32.mrb[0].mxu0
  %v1407 = vadd.f32 %v1359, %v1406
  %v1408 = vpop.f32.mrb[0].mxu0
  %1409 = vdwg.mxu0
  %v1410 = vmul.f32 %v1404, 0.01
  %v1411 = vmul.f32 %v1407, 0.01
  %v1412 = vmax.f32 %v1404, %v1410
  %v1413 = vmax.f32 %v1407, %v1411
  %v1414 = vpack.c.bf16 %v1413, %v1412
  %v1415 = vld [vmem:[%s19] sm:$0x1]
  %v1416 = vld [vmem:[#allocation2] sm:$0x1]
  %1418 = vset.pattern.permute.xlu0 0
  %1419 = vperm.xlu0 %1418, %v1416
  %v1420 = vpop.permute.xlu0 %1419
  %v1422 = vlaneseq
  %v1423 = vshrl.u32 %v1422, 7
  %v1424 = vsub.s32 0, %v1423
  %v1425 = vrot.slane %v1420, %v1424
  %vm1426 = vcmask 130048
  %v1428 = vsel %vm1426, %v1415, 0
  %1430 = vmatprep.subr.bf16.mxu0 0
  %1431 = vmatpush1.bf16.msra.mxu0 %v1414
  %1432 = vmatprep.subr.bf16.mxu0 0
  %1433 = vmatpush1.bf16.msra.mxu0 0
  %1434 = vmatprep.subr.bf16.mxu0 0
  %1435 = vmatpush1.bf16.msra.mxu0 0
  %1436 = vmatprep.subr.bf16.mxu0 0
  %1437 = vmatpush1.bf16.msra.mxu0 0
  %1438 = vmatprep.subr.bf16.mxu0 0
  %1439 = vmatpush1.bf16.msra.mxu0 0
  %1440 = vmatprep.subr.bf16.mxu0 0
  %1441 = vmatpush1.bf16.msra.mxu0 0
  %1442 = vmatprep.subr.bf16.mxu0 0
  %1443 = vmatpush1.bf16.msra.mxu0 0
  %1444 = vmatprep.subr.bf16.mxu0 0
  %1445 = vmatpush1.bf16.msra.mxu0 0
  %1446 = vmatprep.subr.bf16.mxu0 0
  %1447 = vmatpush1.bf16.msra.mxu0 0
  %1448 = vmatprep.subr.bf16.mxu0 0
  %1449 = vmatpush1.bf16.msra.mxu0 0
  %1450 = vmatprep.subr.bf16.mxu0 0
  %1451 = vmatpush1.bf16.msra.mxu0 0
  %1452 = vmatprep.subr.bf16.mxu0 0
  %1453 = vmatpush1.bf16.msra.mxu0 0
  %1454 = vmatprep.subr.bf16.mxu0 0
  %1455 = vmatpush1.bf16.msra.mxu0 0
  %1456 = vmatprep.subr.bf16.mxu0 0
  %1457 = vmatpush1.bf16.msra.mxu0 0
  %1458 = vmatprep.subr.bf16.mxu0 0
  %1459 = vmatpush1.bf16.msra.mxu0 0
  %1460 = vmatprep.subr.bf16.mxu0 0
  %1461 = vmatpush1.bf16.msra.mxu0 0
  %1462 = vmatprep.mubr.bf16.mxu0 0
  %1463 = vmatmul.mubr.bf16.gmra.mrb[0].mxu0 %v1428
  %v1464 = vpop.f32.mrb[0].mxu0
  %v1465 = vadd.f32 %v1425, %v1464
  %v1466 = vpop.f32.mrb[0].mxu0
  %v1467 = vpop.f32.mrb[0].mxu0
  %v1468 = vpop.f32.mrb[0].mxu0
  %1469 = vdwg.mxu0
  %1470 = vst [vmem:[%s21] sm:$0x1] %v1465
  // Predicated region
  $region86: #{two_tower_forward.1} parent=0 // pred_check
    _
  $region87: #{two_tower_forward.1} parent=0 // pred_check_branch
    %1472 = sbr.rel (0) target = $region89
  $region88: #{two_tower_forward.1} parent=0 // pred_region
    _
  $region89: #{two_tower_forward.1} parent=0 // pred_fallthru
    _
  // Predicated region
  $region90: #{two_tower_forward.1} parent=0 // pred_check
    _
  $region91: #{two_tower_forward.1} parent=0 // pred_check_branch
    %1474 = sbr.rel (0) target = $region93
  $region92: #{two_tower_forward.1} parent=0 // pred_region
    _
  $region93: #{two_tower_forward.1} parent=0 // pred_fallthru
    _

</llo_original>
